<compile_context>
chip_gen: v7x
topology: tpu7x:2x2x1
jax: 0.10.0
libtpu: 0.0.40
codegen_flags: <defaults>
</compile_context>

<pallas_src>
import jax
import jax.numpy as jnp
from jax.experimental import pallas as pl
from jax.experimental.pallas import tpu as pltpu


# ----------------------------------------------------------------------------
# Fused Pallas kernel (built as a closure over static sizes)
# ----------------------------------------------------------------------------
def _make_fused_lstm_kernel(num_layers, seq_len, hidden_size):
    T = seq_len
    H = hidden_size

    def kernel(*refs):
        # refs = (x, w_0, b_0, ..., w_{L-1}, b_{L-1}, w_head, b_head, out)
        x_ref = refs[0]
        layer_refs = refs[1:1 + 2 * num_layers]
        wh_ref, bh_ref, o_ref = refs[1 + 2 * num_layers:]

        B = x_ref.shape[0]

        # Load everything once; it stays VMEM/vreg resident for all timesteps.
        x_all = x_ref[...]                                       # (B, T, F) f32
        ws = [layer_refs[2 * l][...] for l in range(num_layers)]     # bf16 (F_l+H, 4H)
        bs = [layer_refs[2 * l + 1][...] for l in range(num_layers)]  # f32  (1, 4H)
        wh = wh_ref[...]                                         # bf16 (H, Lp)
        bh = bh_ref[...]                                         # f32  (1, Lp)

        # Lane mask selecting the 'g' (tanh) gate lanes.
        # PyTorch gate ordering is [i, f, g, o]; i/f/o get sigmoid, g gets tanh.
        lane = jax.lax.broadcasted_iota(jnp.int32, (B, 4 * H), 1)
        g_lanes = (lane >= 2 * H) & (lane < 3 * H)

        h = [jnp.zeros((B, H), jnp.float32) for _ in range(num_layers)]
        c = [jnp.zeros((B, H), jnp.float32) for _ in range(num_layers)]

        for t in range(T):                       # static unroll (T is small)
            xin = x_all[:, t, :]                 # (B, F) f32
            for l in range(num_layers):
                # Fused input/hidden matmul: [x_t, h] @ [W_ih ; W_hh] + b
                inp = jnp.concatenate([xin, h[l]], axis=1).astype(jnp.bfloat16)
                gates = jnp.dot(inp, ws[l],
                                preferred_element_type=jnp.float32) + bs[l]

                # Full-vreg activation (128 lanes), then split for c/h update.
                act = jnp.where(g_lanes, jnp.tanh(gates), jax.nn.sigmoid(gates))
                i_g = act[:, 0 * H:1 * H]
                f_g = act[:, 1 * H:2 * H]
                g_g = act[:, 2 * H:3 * H]
                o_g = act[:, 3 * H:4 * H]

                c[l] = f_g * c[l] + i_g * g_g
                h[l] = o_g * jnp.tanh(c[l])
                xin = h[l]

            # Fused Linear head (output padded to 128 lanes -> lane-dense store).
            y_t = jnp.dot(xin.astype(jnp.bfloat16), wh,
                          preferred_element_type=jnp.float32) + bh   # (B, Lp)
            o_ref[:, t:t + 1, :] = y_t[:, None, :]

    return kernel


# ----------------------------------------------------------------------------
# Wrapper
# ----------------------------------------------------------------------------
@jax.jit
def lstm_model_forward(feature, lstm_params, label_w, label_b):
    """feature: (B, T, F) batch_first (matches PyTorch). Returns (B, T, L)."""
    feature = jnp.asarray(feature, jnp.float32)
    B, T, F = feature.shape
    num_layers = len(lstm_params)
    H = lstm_params[0][1].shape[1]               # w_hh: (4H, H)
    L = label_w.shape[0]
    L_pad = ((L + 127) // 128) * 128             # lane-dense head output

    args = [feature]
    in_specs = [pl.BlockSpec((B, T, F), lambda i: (0, 0, 0))]

    for (w_ih, w_hh, b_ih, b_hh) in lstm_params:
        w = jnp.concatenate(
            [jnp.asarray(w_ih, jnp.float32).T,
             jnp.asarray(w_hh, jnp.float32).T], axis=0).astype(jnp.bfloat16)
        b = jnp.asarray(b_ih + b_hh, jnp.float32).reshape(1, 4 * H)
        args += [w, b]
        in_specs += [pl.BlockSpec(w.shape, lambda i: (0, 0)),
                     pl.BlockSpec(b.shape, lambda i: (0, 0))]

    wh = (jnp.zeros((H, L_pad), jnp.float32)
          .at[:, :L].set(jnp.asarray(label_w, jnp.float32).T)
          .astype(jnp.bfloat16))
    bh = (jnp.zeros((1, L_pad), jnp.float32)
          .at[:, :L].set(jnp.asarray(label_b, jnp.float32)))
    args += [wh, bh]
    in_specs += [pl.BlockSpec(wh.shape, lambda i: (0, 0)),
                 pl.BlockSpec(bh.shape, lambda i: (0, 0))]

    kernel = _make_fused_lstm_kernel(num_layers, T, H)
    y_pad = pl.pallas_call(
        kernel,
        out_shape=jax.ShapeDtypeStruct((B, T, L_pad), jnp.float32),
        grid=(1,),
        in_specs=in_specs,
        out_specs=pl.BlockSpec((B, T, L_pad), lambda i: (0, 0, 0)),
        compiler_params=pltpu.CompilerParams(
            dimension_semantics=("arbitrary",)),
    )(*args)
    return y_pad[:, :, :L]


# ----------------------------------------------------------------------------
# Pure-JAX reference (semantics of torch.nn.LSTM + Linear forward)
# ----------------------------------------------------------------------------
def lstm_model_ref(feature, lstm_params, label_w, label_b):
    x = feature
    for (w_ih, w_hh, b_ih, b_hh) in lstm_params:
        B, T, _ = x.shape
        H = w_hh.shape[1]
        h = jnp.zeros((B, H), jnp.float32)
        c = jnp.zeros((B, H), jnp.float32)
        outs = []
        for t in range(T):
            g = x[:, t] @ w_ih.T + b_ih + h @ w_hh.T + b_hh
            i = jax.nn.sigmoid(g[:, 0 * H:1 * H])
            f = jax.nn.sigmoid(g[:, 1 * H:2 * H])
            gg = jnp.tanh(g[:, 2 * H:3 * H])
            o = jax.nn.sigmoid(g[:, 3 * H:4 * H])
            c = f * c + i * gg
            h = o * jnp.tanh(c)
            outs.append(h)
        x = jnp.stack(outs, axis=1)
    return x @ label_w.T + label_b


# ----------------------------------------------------------------------------
# Main
# ----------------------------------------------------------------------------
if __name__ == "__main__":
    batch_size = 8
    seq_len = 8
    features_size = 16
    hidden_size = 32
    layers_count = 2
    labels_size = 8

    key = jax.random.PRNGKey(0)
    k_feat, key = jax.random.split(key)
    feature = jax.random.normal(
        k_feat, (batch_size, seq_len, features_size), jnp.float32)
    data = {"feature": feature}

    # PyTorch-style uniform(-1/sqrt(H), 1/sqrt(H)) init.
    bound = 1.0 / jnp.sqrt(jnp.float32(hidden_size))
    lstm_params = []
    for layer in range(layers_count):
        in_size = features_size if layer == 0 else hidden_size
        k1, k2, k3, k4, key = jax.random.split(key, 5)
        w_ih = jax.random.uniform(k1, (4 * hidden_size, in_size),
                                  jnp.float32, -bound, bound)
        w_hh = jax.random.uniform(k2, (4 * hidden_size, hidden_size),
                                  jnp.float32, -bound, bound)
        b_ih = jax.random.uniform(k3, (4 * hidden_size,),
                                  jnp.float32, -bound, bound)
        b_hh = jax.random.uniform(k4, (4 * hidden_size,),
                                  jnp.float32, -bound, bound)
        lstm_params.append((w_ih, w_hh, b_ih, b_hh))
    lstm_params = tuple(lstm_params)

    k5, k6, key = jax.random.split(key, 3)
    label_w = jax.random.uniform(k5, (labels_size, hidden_size),
                                 jnp.float32, -bound, bound)
    label_b = jax.random.uniform(k6, (labels_size,),
                                 jnp.float32, -bound, bound)

    out = lstm_model_forward(data["feature"], lstm_params, label_w, label_b)
    out = jax.block_until_ready(out)

    ref = lstm_model_ref(data["feature"], lstm_params, label_w, label_b)
    assert out.shape == (batch_size, seq_len, labels_size), out.shape
    assert jnp.allclose(out, ref, atol=2e-2, rtol=2e-2), (
        float(jnp.max(jnp.abs(out - ref))))

    print("KERNEL_OK")
</pallas_src>

<mosaic_0001>
module attributes {stable_mosaic.version = 11 : i64} {
  func.func @kernel(%arg0: i32, %arg1: memref<8x8x16xf32, #tpu.memory_space<vmem>>, %arg2: memref<48x128xbf16, #tpu.memory_space<vmem>>, %arg3: memref<1x128xf32, #tpu.memory_space<vmem>>, %arg4: memref<64x128xbf16, #tpu.memory_space<vmem>>, %arg5: memref<1x128xf32, #tpu.memory_space<vmem>>, %arg6: memref<32x128xbf16, #tpu.memory_space<vmem>>, %arg7: memref<1x128xf32, #tpu.memory_space<vmem>>, %arg8: memref<8x8x128xf32, #tpu.memory_space<vmem>>) attributes {dimension_semantics = [#tpu.dimension_semantics<arbitrary>], iteration_bounds = array<i64: 1>, scalar_prefetch = 0 : i64, scratch_operands = 0 : i64, tpu.core_type = #tpu.core_type<tc>, window_params = [{pipeline_mode = #tpu.pipeline_mode<synchronous>, transform_indices = @transform_0, window_bounds = array<i64: 8, 8, 16>}, {pipeline_mode = #tpu.pipeline_mode<synchronous>, transform_indices = @transform_1, window_bounds = array<i64: 48, 128>}, {pipeline_mode = #tpu.pipeline_mode<synchronous>, transform_indices = @transform_2, window_bounds = array<i64: 1, 128>}, {pipeline_mode = #tpu.pipeline_mode<synchronous>, transform_indices = @transform_3, window_bounds = array<i64: 64, 128>}, {pipeline_mode = #tpu.pipeline_mode<synchronous>, transform_indices = @transform_4, window_bounds = array<i64: 1, 128>}, {pipeline_mode = #tpu.pipeline_mode<synchronous>, transform_indices = @transform_5, window_bounds = array<i64: 32, 128>}, {pipeline_mode = #tpu.pipeline_mode<synchronous>, transform_indices = @transform_6, window_bounds = array<i64: 1, 128>}, {pipeline_mode = #tpu.pipeline_mode<synchronous>, transform_indices = @transform_7, window_bounds = array<i64: 8, 8, 128>}]} {
    %c0 = arith.constant 0 : index
    %c0_0 = arith.constant 0 : index
    %c0_1 = arith.constant 0 : index
    %0 = vector.load %arg1[%c0, %c0_0, %c0_1] : memref<8x8x16xf32, #tpu.memory_space<vmem>>, vector<8x8x16xf32>
    %c0_2 = arith.constant 0 : index
    %c0_3 = arith.constant 0 : index
    %1 = vector.load %arg2[%c0_2, %c0_3] : memref<48x128xbf16, #tpu.memory_space<vmem>>, vector<48x128xbf16>
    %c0_4 = arith.constant 0 : index
    %c0_5 = arith.constant 0 : index
    %2 = vector.load %arg4[%c0_4, %c0_5] : memref<64x128xbf16, #tpu.memory_space<vmem>>, vector<64x128xbf16>
    %c0_6 = arith.constant 0 : index
    %c0_7 = arith.constant 0 : index
    %3 = vector.load %arg3[%c0_6, %c0_7] : memref<1x128xf32, #tpu.memory_space<vmem>>, vector<1x128xf32>
    %c0_8 = arith.constant 0 : index
    %c0_9 = arith.constant 0 : index
    %4 = vector.load %arg5[%c0_8, %c0_9] : memref<1x128xf32, #tpu.memory_space<vmem>>, vector<1x128xf32>
    %c0_10 = arith.constant 0 : index
    %c0_11 = arith.constant 0 : index
    %5 = vector.load %arg6[%c0_10, %c0_11] : memref<32x128xbf16, #tpu.memory_space<vmem>>, vector<32x128xbf16>
    %c0_12 = arith.constant 0 : index
    %c0_13 = arith.constant 0 : index
    %6 = vector.load %arg7[%c0_12, %c0_13] : memref<1x128xf32, #tpu.memory_space<vmem>>, vector<1x128xf32>
    %7 = tpu.iota {dimensions = array<i32: 1>} : vector<8x128xi32>
    %c64_i32 = arith.constant 64 : i32
    %8 = vector.broadcast %c64_i32 : i32 to vector<8x128xi32>
    %9 = arith.cmpi sge, %7, %8 : vector<8x128xi32>
    %c96_i32 = arith.constant 96 : i32
    %10 = vector.broadcast %c96_i32 : i32 to vector<8x128xi32>
    %11 = arith.cmpi slt, %7, %10 : vector<8x128xi32>
    %12 = arith.andi %9, %11 : vector<8x128xi1>
    %cst = arith.constant 0.000000e+00 : f32
    %13 = vector.broadcast %cst : f32 to vector<8x32xf32>
    %cst_14 = arith.constant 0.000000e+00 : f32
    %14 = vector.broadcast %cst_14 : f32 to vector<8x32xf32>
    %cst_15 = arith.constant 0.000000e+00 : f32
    %15 = vector.broadcast %cst_15 : f32 to vector<8x32xf32>
    %cst_16 = arith.constant 0.000000e+00 : f32
    %16 = vector.broadcast %cst_16 : f32 to vector<8x32xf32>
    %17 = vector.extract_strided_slice %0 {offsets = [0, 0, 0], sizes = [8, 1, 16], strides = [1, 1, 1]} : vector<8x8x16xf32> to vector<8x1x16xf32>
    %18 = vector.shape_cast %17 : vector<8x1x16xf32> to vector<8x16xf32>
    %19 = tpu.concatenate %18, %13 in 1 : vector<8x16xf32>, vector<8x32xf32> -> vector<8x48xf32>
    %20 = arith.truncf %19 : vector<8x48xf32> to vector<8x48xbf16>
    %cst_17 = arith.constant dense<0.000000e+00> : vector<8x128xf32>
    %21 = tpu.matmul %20, %1, %cst_17 {dimension_numbers = #tpu.dot_dimension_numbers<[1], [0], [0], [1], [0, 0, 1, 1], [], []>} : vector<8x48xbf16>, vector<48x128xbf16>, vector<8x128xf32> -> vector<8x128xf32>
    %22 = vector.broadcast %3 : vector<1x128xf32> to vector<8x128xf32>
    %23 = arith.addf %21, %22 : vector<8x128xf32>
    %24 = math.tanh %23 : vector<8x128xf32>
    %25 = arith.negf %23 : vector<8x128xf32>
    %26 = math.exp %25 : vector<8x128xf32>
    %cst_18 = arith.constant 1.000000e+00 : f32
    %27 = vector.broadcast %cst_18 : f32 to vector<8x128xf32>
    %28 = arith.addf %27, %26 : vector<8x128xf32>
    %29 = arith.divf %27, %28 : vector<8x128xf32>
    %30 = arith.select %12, %24, %29 : vector<8x128xi1>, vector<8x128xf32>
    %31 = vector.extract_strided_slice %30 {offsets = [0, 0], sizes = [8, 32], strides = [1, 1]} : vector<8x128xf32> to vector<8x32xf32>
    %32 = vector.extract_strided_slice %30 {offsets = [0, 32], sizes = [8, 32], strides = [1, 1]} : vector<8x128xf32> to vector<8x32xf32>
    %33 = vector.extract_strided_slice %30 {offsets = [0, 64], sizes = [8, 32], strides = [1, 1]} : vector<8x128xf32> to vector<8x32xf32>
    %34 = vector.extract_strided_slice %30 {offsets = [0, 96], sizes = [8, 32], strides = [1, 1]} : vector<8x128xf32> to vector<8x32xf32>
    %35 = arith.mulf %32, %15 : vector<8x32xf32>
    %36 = arith.mulf %31, %33 : vector<8x32xf32>
    %37 = arith.addf %35, %36 : vector<8x32xf32>
    %38 = math.tanh %37 : vector<8x32xf32>
    %39 = arith.mulf %34, %38 : vector<8x32xf32>
    %40 = tpu.concatenate %39, %14 in 1 : vector<8x32xf32>, vector<8x32xf32> -> vector<8x64xf32>
    %41 = arith.truncf %40 : vector<8x64xf32> to vector<8x64xbf16>
    %cst_19 = arith.constant dense<0.000000e+00> : vector<8x128xf32>
    %42 = tpu.matmul %41, %2, %cst_19 {dimension_numbers = #tpu.dot_dimension_numbers<[1], [0], [0], [1], [0, 0, 1, 1], [], []>} : vector<8x64xbf16>, vector<64x128xbf16>, vector<8x128xf32> -> vector<8x128xf32>
    %43 = vector.broadcast %4 : vector<1x128xf32> to vector<8x128xf32>
    %44 = arith.addf %42, %43 : vector<8x128xf32>
    %45 = math.tanh %44 : vector<8x128xf32>
    %46 = arith.negf %44 : vector<8x128xf32>
    %47 = math.exp %46 : vector<8x128xf32>
    %cst_20 = arith.constant 1.000000e+00 : f32
    %48 = vector.broadcast %cst_20 : f32 to vector<8x128xf32>
    %49 = arith.addf %48, %47 : vector<8x128xf32>
    %50 = arith.divf %48, %49 : vector<8x128xf32>
    %51 = arith.select %12, %45, %50 : vector<8x128xi1>, vector<8x128xf32>
    %52 = vector.extract_strided_slice %51 {offsets = [0, 0], sizes = [8, 32], strides = [1, 1]} : vector<8x128xf32> to vector<8x32xf32>
    %53 = vector.extract_strided_slice %51 {offsets = [0, 32], sizes = [8, 32], strides = [1, 1]} : vector<8x128xf32> to vector<8x32xf32>
    %54 = vector.extract_strided_slice %51 {offsets = [0, 64], sizes = [8, 32], strides = [1, 1]} : vector<8x128xf32> to vector<8x32xf32>
    %55 = vector.extract_strided_slice %51 {offsets = [0, 96], sizes = [8, 32], strides = [1, 1]} : vector<8x128xf32> to vector<8x32xf32>
    %56 = arith.mulf %53, %16 : vector<8x32xf32>
    %57 = arith.mulf %52, %54 : vector<8x32xf32>
    %58 = arith.addf %56, %57 : vector<8x32xf32>
    %59 = math.tanh %58 : vector<8x32xf32>
    %60 = arith.mulf %55, %59 : vector<8x32xf32>
    %61 = arith.truncf %60 : vector<8x32xf32> to vector<8x32xbf16>
    %cst_21 = arith.constant dense<0.000000e+00> : vector<8x128xf32>
    %62 = tpu.matmul %61, %5, %cst_21 {dimension_numbers = #tpu.dot_dimension_numbers<[1], [0], [0], [1], [0, 0, 1, 1], [], []>} : vector<8x32xbf16>, vector<32x128xbf16>, vector<8x128xf32> -> vector<8x128xf32>
    %63 = vector.broadcast %6 : vector<1x128xf32> to vector<8x128xf32>
    %64 = arith.addf %62, %63 : vector<8x128xf32>
    %65 = vector.shape_cast %64 : vector<8x128xf32> to vector<8x1x128xf32>
    %c0_22 = arith.constant 0 : index
    %c0_23 = arith.constant 0 : index
    %c0_24 = arith.constant 0 : index
    %66 = vector.load %arg8[%c0_22, %c0_23, %c0_24] : memref<8x8x128xf32, #tpu.memory_space<vmem>>, vector<8x1x128xf32>
    tpu.vector_store %arg8[%c0_22, %c0_23, %c0_24], %65 {strides = array<i32>} : memref<8x8x128xf32, #tpu.memory_space<vmem>>, vector<8x1x128xf32>,
    %67 = vector.extract_strided_slice %0 {offsets = [0, 1, 0], sizes = [8, 1, 16], strides = [1, 1, 1]} : vector<8x8x16xf32> to vector<8x1x16xf32>
    %68 = vector.shape_cast %67 : vector<8x1x16xf32> to vector<8x16xf32>
    %69 = tpu.concatenate %68, %39 in 1 : vector<8x16xf32>, vector<8x32xf32> -> vector<8x48xf32>
    %70 = arith.truncf %69 : vector<8x48xf32> to vector<8x48xbf16>
    %cst_25 = arith.constant dense<0.000000e+00> : vector<8x128xf32>
    %71 = tpu.matmul %70, %1, %cst_25 {dimension_numbers = #tpu.dot_dimension_numbers<[1], [0], [0], [1], [0, 0, 1, 1], [], []>} : vector<8x48xbf16>, vector<48x128xbf16>, vector<8x128xf32> -> vector<8x128xf32>
    %72 = vector.broadcast %3 : vector<1x128xf32> to vector<8x128xf32>
    %73 = arith.addf %71, %72 : vector<8x128xf32>
    %74 = math.tanh %73 : vector<8x128xf32>
    %75 = arith.negf %73 : vector<8x128xf32>
    %76 = math.exp %75 : vector<8x128xf32>
    %cst_26 = arith.constant 1.000000e+00 : f32
    %77 = vector.broadcast %cst_26 : f32 to vector<8x128xf32>
    %78 = arith.addf %77, %76 : vector<8x128xf32>
    %79 = arith.divf %77, %78 : vector<8x128xf32>
    %80 = arith.select %12, %74, %79 : vector<8x128xi1>, vector<8x128xf32>
    %81 = vector.extract_strided_slice %80 {offsets = [0, 0], sizes = [8, 32], strides = [1, 1]} : vector<8x128xf32> to vector<8x32xf32>
    %82 = vector.extract_strided_slice %80 {offsets = [0, 32], sizes = [8, 32], strides = [1, 1]} : vector<8x128xf32> to vector<8x32xf32>
    %83 = vector.extract_strided_slice %80 {offsets = [0, 64], sizes = [8, 32], strides = [1, 1]} : vector<8x128xf32> to vector<8x32xf32>
    %84 = vector.extract_strided_slice %80 {offsets = [0, 96], sizes = [8, 32], strides = [1, 1]} : vector<8x128xf32> to vector<8x32xf32>
    %85 = arith.mulf %82, %37 : vector<8x32xf32>
    %86 = arith.mulf %81, %83 : vector<8x32xf32>
    %87 = arith.addf %85, %86 : vector<8x32xf32>
    %88 = math.tanh %87 : vector<8x32xf32>
    %89 = arith.mulf %84, %88 : vector<8x32xf32>
    %90 = tpu.concatenate %89, %60 in 1 : vector<8x32xf32>, vector<8x32xf32> -> vector<8x64xf32>
    %91 = arith.truncf %90 : vector<8x64xf32> to vector<8x64xbf16>
    %cst_27 = arith.constant dense<0.000000e+00> : vector<8x128xf32>
    %92 = tpu.matmul %91, %2, %cst_27 {dimension_numbers = #tpu.dot_dimension_numbers<[1], [0], [0], [1], [0, 0, 1, 1], [], []>} : vector<8x64xbf16>, vector<64x128xbf16>, vector<8x128xf32> -> vector<8x128xf32>
    %93 = vector.broadcast %4 : vector<1x128xf32> to vector<8x128xf32>
    %94 = arith.addf %92, %93 : vector<8x128xf32>
    %95 = math.tanh %94 : vector<8x128xf32>
    %96 = arith.negf %94 : vector<8x128xf32>
    %97 = math.exp %96 : vector<8x128xf32>
    %cst_28 = arith.constant 1.000000e+00 : f32
    %98 = vector.broadcast %cst_28 : f32 to vector<8x128xf32>
    %99 = arith.addf %98, %97 : vector<8x128xf32>
    %100 = arith.divf %98, %99 : vector<8x128xf32>
    %101 = arith.select %12, %95, %100 : vector<8x128xi1>, vector<8x128xf32>
    %102 = vector.extract_strided_slice %101 {offsets = [0, 0], sizes = [8, 32], strides = [1, 1]} : vector<8x128xf32> to vector<8x32xf32>
    %103 = vector.extract_strided_slice %101 {offsets = [0, 32], sizes = [8, 32], strides = [1, 1]} : vector<8x128xf32> to vector<8x32xf32>
    %104 = vector.extract_strided_slice %101 {offsets = [0, 64], sizes = [8, 32], strides = [1, 1]} : vector<8x128xf32> to vector<8x32xf32>
    %105 = vector.extract_strided_slice %101 {offsets = [0, 96], sizes = [8, 32], strides = [1, 1]} : vector<8x128xf32> to vector<8x32xf32>
    %106 = arith.mulf %103, %58 : vector<8x32xf32>
    %107 = arith.mulf %102, %104 : vector<8x32xf32>
    %108 = arith.addf %106, %107 : vector<8x32xf32>
    %109 = math.tanh %108 : vector<8x32xf32>
    %110 = arith.mulf %105, %109 : vector<8x32xf32>
    %111 = arith.truncf %110 : vector<8x32xf32> to vector<8x32xbf16>
    %cst_29 = arith.constant dense<0.000000e+00> : vector<8x128xf32>
    %112 = tpu.matmul %111, %5, %cst_29 {dimension_numbers = #tpu.dot_dimension_numbers<[1], [0], [0], [1], [0, 0, 1, 1], [], []>} : vector<8x32xbf16>, vector<32x128xbf16>, vector<8x128xf32> -> vector<8x128xf32>
    %113 = vector.broadcast %6 : vector<1x128xf32> to vector<8x128xf32>
    %114 = arith.addf %112, %113 : vector<8x128xf32>
    %115 = vector.shape_cast %114 : vector<8x128xf32> to vector<8x1x128xf32>
    %c0_30 = arith.constant 0 : index
    %c1 = arith.constant 1 : index
    %c0_31 = arith.constant 0 : index
    %116 = vector.load %arg8[%c0_30, %c1, %c0_31] : memref<8x8x128xf32, #tpu.memory_space<vmem>>, vector<8x1x128xf32>
    tpu.vector_store %arg8[%c0_30, %c1, %c0_31], %115 {strides = array<i32>} : memref<8x8x128xf32, #tpu.memory_space<vmem>>, vector<8x1x128xf32>,
    %117 = vector.extract_strided_slice %0 {offsets = [0, 2, 0], sizes = [8, 1, 16], strides = [1, 1, 1]} : vector<8x8x16xf32> to vector<8x1x16xf32>
    %118 = vector.shape_cast %117 : vector<8x1x16xf32> to vector<8x16xf32>
    %119 = tpu.concatenate %118, %89 in 1 : vector<8x16xf32>, vector<8x32xf32> -> vector<8x48xf32>
    %120 = arith.truncf %119 : vector<8x48xf32> to vector<8x48xbf16>
    %cst_32 = arith.constant dense<0.000000e+00> : vector<8x128xf32>
    %121 = tpu.matmul %120, %1, %cst_32 {dimension_numbers = #tpu.dot_dimension_numbers<[1], [0], [0], [1], [0, 0, 1, 1], [], []>} : vector<8x48xbf16>, vector<48x128xbf16>, vector<8x128xf32> -> vector<8x128xf32>
    %122 = vector.broadcast %3 : vector<1x128xf32> to vector<8x128xf32>
    %123 = arith.addf %121, %122 : vector<8x128xf32>
    %124 = math.tanh %123 : vector<8x128xf32>
    %125 = arith.negf %123 : vector<8x128xf32>
    %126 = math.exp %125 : vector<8x128xf32>
    %cst_33 = arith.constant 1.000000e+00 : f32
    %127 = vector.broadcast %cst_33 : f32 to vector<8x128xf32>
    %128 = arith.addf %127, %126 : vector<8x128xf32>
    %129 = arith.divf %127, %128 : vector<8x128xf32>
    %130 = arith.select %12, %124, %129 : vector<8x128xi1>, vector<8x128xf32>
    %131 = vector.extract_strided_slice %130 {offsets = [0, 0], sizes = [8, 32], strides = [1, 1]} : vector<8x128xf32> to vector<8x32xf32>
    %132 = vector.extract_strided_slice %130 {offsets = [0, 32], sizes = [8, 32], strides = [1, 1]} : vector<8x128xf32> to vector<8x32xf32>
    %133 = vector.extract_strided_slice %130 {offsets = [0, 64], sizes = [8, 32], strides = [1, 1]} : vector<8x128xf32> to vector<8x32xf32>
    %134 = vector.extract_strided_slice %130 {offsets = [0, 96], sizes = [8, 32], strides = [1, 1]} : vector<8x128xf32> to vector<8x32xf32>
    %135 = arith.mulf %132, %87 : vector<8x32xf32>
    %136 = arith.mulf %131, %133 : vector<8x32xf32>
    %137 = arith.addf %135, %136 : vector<8x32xf32>
    %138 = math.tanh %137 : vector<8x32xf32>
    %139 = arith.mulf %134, %138 : vector<8x32xf32>
    %140 = tpu.concatenate %139, %110 in 1 : vector<8x32xf32>, vector<8x32xf32> -> vector<8x64xf32>
    %141 = arith.truncf %140 : vector<8x64xf32> to vector<8x64xbf16>
    %cst_34 = arith.constant dense<0.000000e+00> : vector<8x128xf32>
    %142 = tpu.matmul %141, %2, %cst_34 {dimension_numbers = #tpu.dot_dimension_numbers<[1], [0], [0], [1], [0, 0, 1, 1], [], []>} : vector<8x64xbf16>, vector<64x128xbf16>, vector<8x128xf32> -> vector<8x128xf32>
    %143 = vector.broadcast %4 : vector<1x128xf32> to vector<8x128xf32>
    %144 = arith.addf %142, %143 : vector<8x128xf32>
    %145 = math.tanh %144 : vector<8x128xf32>
    %146 = arith.negf %144 : vector<8x128xf32>
    %147 = math.exp %146 : vector<8x128xf32>
    %cst_35 = arith.constant 1.000000e+00 : f32
    %148 = vector.broadcast %cst_35 : f32 to vector<8x128xf32>
    %149 = arith.addf %148, %147 : vector<8x128xf32>
    %150 = arith.divf %148, %149 : vector<8x128xf32>
    %151 = arith.select %12, %145, %150 : vector<8x128xi1>, vector<8x128xf32>
    %152 = vector.extract_strided_slice %151 {offsets = [0, 0], sizes = [8, 32], strides = [1, 1]} : vector<8x128xf32> to vector<8x32xf32>
    %153 = vector.extract_strided_slice %151 {offsets = [0, 32], sizes = [8, 32], strides = [1, 1]} : vector<8x128xf32> to vector<8x32xf32>
    %154 = vector.extract_strided_slice %151 {offsets = [0, 64], sizes = [8, 32], strides = [1, 1]} : vector<8x128xf32> to vector<8x32xf32>
    %155 = vector.extract_strided_slice %151 {offsets = [0, 96], sizes = [8, 32], strides = [1, 1]} : vector<8x128xf32> to vector<8x32xf32>
    %156 = arith.mulf %153, %108 : vector<8x32xf32>
    %157 = arith.mulf %152, %154 : vector<8x32xf32>
    %158 = arith.addf %156, %157 : vector<8x32xf32>
    %159 = math.tanh %158 : vector<8x32xf32>
    %160 = arith.mulf %155, %159 : vector<8x32xf32>
    %161 = arith.truncf %160 : vector<8x32xf32> to vector<8x32xbf16>
    %cst_36 = arith.constant dense<0.000000e+00> : vector<8x128xf32>
    %162 = tpu.matmul %161, %5, %cst_36 {dimension_numbers = #tpu.dot_dimension_numbers<[1], [0], [0], [1], [0, 0, 1, 1], [], []>} : vector<8x32xbf16>, vector<32x128xbf16>, vector<8x128xf32> -> vector<8x128xf32>
    %163 = vector.broadcast %6 : vector<1x128xf32> to vector<8x128xf32>
    %164 = arith.addf %162, %163 : vector<8x128xf32>
    %165 = vector.shape_cast %164 : vector<8x128xf32> to vector<8x1x128xf32>
    %c0_37 = arith.constant 0 : index
    %c2 = arith.constant 2 : index
    %c0_38 = arith.constant 0 : index
    %166 = vector.load %arg8[%c0_37, %c2, %c0_38] : memref<8x8x128xf32, #tpu.memory_space<vmem>>, vector<8x1x128xf32>
    tpu.vector_store %arg8[%c0_37, %c2, %c0_38], %165 {strides = array<i32>} : memref<8x8x128xf32, #tpu.memory_space<vmem>>, vector<8x1x128xf32>,
    %167 = vector.extract_strided_slice %0 {offsets = [0, 3, 0], sizes = [8, 1, 16], strides = [1, 1, 1]} : vector<8x8x16xf32> to vector<8x1x16xf32>
    %168 = vector.shape_cast %167 : vector<8x1x16xf32> to vector<8x16xf32>
    %169 = tpu.concatenate %168, %139 in 1 : vector<8x16xf32>, vector<8x32xf32> -> vector<8x48xf32>
    %170 = arith.truncf %169 : vector<8x48xf32> to vector<8x48xbf16>
    %cst_39 = arith.constant dense<0.000000e+00> : vector<8x128xf32>
    %171 = tpu.matmul %170, %1, %cst_39 {dimension_numbers = #tpu.dot_dimension_numbers<[1], [0], [0], [1], [0, 0, 1, 1], [], []>} : vector<8x48xbf16>, vector<48x128xbf16>, vector<8x128xf32> -> vector<8x128xf32>
    %172 = vector.broadcast %3 : vector<1x128xf32> to vector<8x128xf32>
    %173 = arith.addf %171, %172 : vector<8x128xf32>
    %174 = math.tanh %173 : vector<8x128xf32>
    %175 = arith.negf %173 : vector<8x128xf32>
    %176 = math.exp %175 : vector<8x128xf32>
    %cst_40 = arith.constant 1.000000e+00 : f32
    %177 = vector.broadcast %cst_40 : f32 to vector<8x128xf32>
    %178 = arith.addf %177, %176 : vector<8x128xf32>
    %179 = arith.divf %177, %178 : vector<8x128xf32>
    %180 = arith.select %12, %174, %179 : vector<8x128xi1>, vector<8x128xf32>
    %181 = vector.extract_strided_slice %180 {offsets = [0, 0], sizes = [8, 32], strides = [1, 1]} : vector<8x128xf32> to vector<8x32xf32>
    %182 = vector.extract_strided_slice %180 {offsets = [0, 32], sizes = [8, 32], strides = [1, 1]} : vector<8x128xf32> to vector<8x32xf32>
    %183 = vector.extract_strided_slice %180 {offsets = [0, 64], sizes = [8, 32], strides = [1, 1]} : vector<8x128xf32> to vector<8x32xf32>
    %184 = vector.extract_strided_slice %180 {offsets = [0, 96], sizes = [8, 32], strides = [1, 1]} : vector<8x128xf32> to vector<8x32xf32>
    %185 = arith.mulf %182, %137 : vector<8x32xf32>
    %186 = arith.mulf %181, %183 : vector<8x32xf32>
    %187 = arith.addf %185, %186 : vector<8x32xf32>
    %188 = math.tanh %187 : vector<8x32xf32>
    %189 = arith.mulf %184, %188 : vector<8x32xf32>
    %190 = tpu.concatenate %189, %160 in 1 : vector<8x32xf32>, vector<8x32xf32> -> vector<8x64xf32>
    %191 = arith.truncf %190 : vector<8x64xf32> to vector<8x64xbf16>
    %cst_41 = arith.constant dense<0.000000e+00> : vector<8x128xf32>
    %192 = tpu.matmul %191, %2, %cst_41 {dimension_numbers = #tpu.dot_dimension_numbers<[1], [0], [0], [1], [0, 0, 1, 1], [], []>} : vector<8x64xbf16>, vector<64x128xbf16>, vector<8x128xf32> -> vector<8x128xf32>
    %193 = vector.broadcast %4 : vector<1x128xf32> to vector<8x128xf32>
    %194 = arith.addf %192, %193 : vector<8x128xf32>
    %195 = math.tanh %194 : vector<8x128xf32>
    %196 = arith.negf %194 : vector<8x128xf32>
    %197 = math.exp %196 : vector<8x128xf32>
    %cst_42 = arith.constant 1.000000e+00 : f32
    %198 = vector.broadcast %cst_42 : f32 to vector<8x128xf32>
    %199 = arith.addf %198, %197 : vector<8x128xf32>
    %200 = arith.divf %198, %199 : vector<8x128xf32>
    %201 = arith.select %12, %195, %200 : vector<8x128xi1>, vector<8x128xf32>
    %202 = vector.extract_strided_slice %201 {offsets = [0, 0], sizes = [8, 32], strides = [1, 1]} : vector<8x128xf32> to vector<8x32xf32>
    %203 = vector.extract_strided_slice %201 {offsets = [0, 32], sizes = [8, 32], strides = [1, 1]} : vector<8x128xf32> to vector<8x32xf32>
    %204 = vector.extract_strided_slice %201 {offsets = [0, 64], sizes = [8, 32], strides = [1, 1]} : vector<8x128xf32> to vector<8x32xf32>
    %205 = vector.extract_strided_slice %201 {offsets = [0, 96], sizes = [8, 32], strides = [1, 1]} : vector<8x128xf32> to vector<8x32xf32>
    %206 = arith.mulf %203, %158 : vector<8x32xf32>
    %207 = arith.mulf %202, %204 : vector<8x32xf32>
    %208 = arith.addf %206, %207 : vector<8x32xf32>
    %209 = math.tanh %208 : vector<8x32xf32>
    %210 = arith.mulf %205, %209 : vector<8x32xf32>
    %211 = arith.truncf %210 : vector<8x32xf32> to vector<8x32xbf16>
    %cst_43 = arith.constant dense<0.000000e+00> : vector<8x128xf32>
    %212 = tpu.matmul %211, %5, %cst_43 {dimension_numbers = #tpu.dot_dimension_numbers<[1], [0], [0], [1], [0, 0, 1, 1], [], []>} : vector<8x32xbf16>, vector<32x128xbf16>, vector<8x128xf32> -> vector<8x128xf32>
    %213 = vector.broadcast %6 : vector<1x128xf32> to vector<8x128xf32>
    %214 = arith.addf %212, %213 : vector<8x128xf32>
    %215 = vector.shape_cast %214 : vector<8x128xf32> to vector<8x1x128xf32>
    %c0_44 = arith.constant 0 : index
    %c3 = arith.constant 3 : index
    %c0_45 = arith.constant 0 : index
    %216 = vector.load %arg8[%c0_44, %c3, %c0_45] : memref<8x8x128xf32, #tpu.memory_space<vmem>>, vector<8x1x128xf32>
    tpu.vector_store %arg8[%c0_44, %c3, %c0_45], %215 {strides = array<i32>} : memref<8x8x128xf32, #tpu.memory_space<vmem>>, vector<8x1x128xf32>,
    %217 = vector.extract_strided_slice %0 {offsets = [0, 4, 0], sizes = [8, 1, 16], strides = [1, 1, 1]} : vector<8x8x16xf32> to vector<8x1x16xf32>
    %218 = vector.shape_cast %217 : vector<8x1x16xf32> to vector<8x16xf32>
    %219 = tpu.concatenate %218, %189 in 1 : vector<8x16xf32>, vector<8x32xf32> -> vector<8x48xf32>
    %220 = arith.truncf %219 : vector<8x48xf32> to vector<8x48xbf16>
    %cst_46 = arith.constant dense<0.000000e+00> : vector<8x128xf32>
    %221 = tpu.matmul %220, %1, %cst_46 {dimension_numbers = #tpu.dot_dimension_numbers<[1], [0], [0], [1], [0, 0, 1, 1], [], []>} : vector<8x48xbf16>, vector<48x128xbf16>, vector<8x128xf32> -> vector<8x128xf32>
    %222 = vector.broadcast %3 : vector<1x128xf32> to vector<8x128xf32>
    %223 = arith.addf %221, %222 : vector<8x128xf32>
    %224 = math.tanh %223 : vector<8x128xf32>
    %225 = arith.negf %223 : vector<8x128xf32>
    %226 = math.exp %225 : vector<8x128xf32>
    %cst_47 = arith.constant 1.000000e+00 : f32
    %227 = vector.broadcast %cst_47 : f32 to vector<8x128xf32>
    %228 = arith.addf %227, %226 : vector<8x128xf32>
    %229 = arith.divf %227, %228 : vector<8x128xf32>
    %230 = arith.select %12, %224, %229 : vector<8x128xi1>, vector<8x128xf32>
    %231 = vector.extract_strided_slice %230 {offsets = [0, 0], sizes = [8, 32], strides = [1, 1]} : vector<8x128xf32> to vector<8x32xf32>
    %232 = vector.extract_strided_slice %230 {offsets = [0, 32], sizes = [8, 32], strides = [1, 1]} : vector<8x128xf32> to vector<8x32xf32>
    %233 = vector.extract_strided_slice %230 {offsets = [0, 64], sizes = [8, 32], strides = [1, 1]} : vector<8x128xf32> to vector<8x32xf32>
    %234 = vector.extract_strided_slice %230 {offsets = [0, 96], sizes = [8, 32], strides = [1, 1]} : vector<8x128xf32> to vector<8x32xf32>
    %235 = arith.mulf %232, %187 : vector<8x32xf32>
    %236 = arith.mulf %231, %233 : vector<8x32xf32>
    %237 = arith.addf %235, %236 : vector<8x32xf32>
    %238 = math.tanh %237 : vector<8x32xf32>
    %239 = arith.mulf %234, %238 : vector<8x32xf32>
    %240 = tpu.concatenate %239, %210 in 1 : vector<8x32xf32>, vector<8x32xf32> -> vector<8x64xf32>
    %241 = arith.truncf %240 : vector<8x64xf32> to vector<8x64xbf16>
    %cst_48 = arith.constant dense<0.000000e+00> : vector<8x128xf32>
    %242 = tpu.matmul %241, %2, %cst_48 {dimension_numbers = #tpu.dot_dimension_numbers<[1], [0], [0], [1], [0, 0, 1, 1], [], []>} : vector<8x64xbf16>, vector<64x128xbf16>, vector<8x128xf32> -> vector<8x128xf32>
    %243 = vector.broadcast %4 : vector<1x128xf32> to vector<8x128xf32>
    %244 = arith.addf %242, %243 : vector<8x128xf32>
    %245 = math.tanh %244 : vector<8x128xf32>
    %246 = arith.negf %244 : vector<8x128xf32>
    %247 = math.exp %246 : vector<8x128xf32>
    %cst_49 = arith.constant 1.000000e+00 : f32
    %248 = vector.broadcast %cst_49 : f32 to vector<8x128xf32>
    %249 = arith.addf %248, %247 : vector<8x128xf32>
    %250 = arith.divf %248, %249 : vector<8x128xf32>
    %251 = arith.select %12, %245, %250 : vector<8x128xi1>, vector<8x128xf32>
    %252 = vector.extract_strided_slice %251 {offsets = [0, 0], sizes = [8, 32], strides = [1, 1]} : vector<8x128xf32> to vector<8x32xf32>
    %253 = vector.extract_strided_slice %251 {offsets = [0, 32], sizes = [8, 32], strides = [1, 1]} : vector<8x128xf32> to vector<8x32xf32>
    %254 = vector.extract_strided_slice %251 {offsets = [0, 64], sizes = [8, 32], strides = [1, 1]} : vector<8x128xf32> to vector<8x32xf32>
    %255 = vector.extract_strided_slice %251 {offsets = [0, 96], sizes = [8, 32], strides = [1, 1]} : vector<8x128xf32> to vector<8x32xf32>
    %256 = arith.mulf %253, %208 : vector<8x32xf32>
    %257 = arith.mulf %252, %254 : vector<8x32xf32>
    %258 = arith.addf %256, %257 : vector<8x32xf32>
    %259 = math.tanh %258 : vector<8x32xf32>
    %260 = arith.mulf %255, %259 : vector<8x32xf32>
    %261 = arith.truncf %260 : vector<8x32xf32> to vector<8x32xbf16>
    %cst_50 = arith.constant dense<0.000000e+00> : vector<8x128xf32>
    %262 = tpu.matmul %261, %5, %cst_50 {dimension_numbers = #tpu.dot_dimension_numbers<[1], [0], [0], [1], [0, 0, 1, 1], [], []>} : vector<8x32xbf16>, vector<32x128xbf16>, vector<8x128xf32> -> vector<8x128xf32>
    %263 = vector.broadcast %6 : vector<1x128xf32> to vector<8x128xf32>
    %264 = arith.addf %262, %263 : vector<8x128xf32>
    %265 = vector.shape_cast %264 : vector<8x128xf32> to vector<8x1x128xf32>
    %c0_51 = arith.constant 0 : index
    %c4 = arith.constant 4 : index
    %c0_52 = arith.constant 0 : index
    %266 = vector.load %arg8[%c0_51, %c4, %c0_52] : memref<8x8x128xf32, #tpu.memory_space<vmem>>, vector<8x1x128xf32>
    tpu.vector_store %arg8[%c0_51, %c4, %c0_52], %265 {strides = array<i32>} : memref<8x8x128xf32, #tpu.memory_space<vmem>>, vector<8x1x128xf32>,
    %267 = vector.extract_strided_slice %0 {offsets = [0, 5, 0], sizes = [8, 1, 16], strides = [1, 1, 1]} : vector<8x8x16xf32> to vector<8x1x16xf32>
    %268 = vector.shape_cast %267 : vector<8x1x16xf32> to vector<8x16xf32>
    %269 = tpu.concatenate %268, %239 in 1 : vector<8x16xf32>, vector<8x32xf32> -> vector<8x48xf32>
    %270 = arith.truncf %269 : vector<8x48xf32> to vector<8x48xbf16>
    %cst_53 = arith.constant dense<0.000000e+00> : vector<8x128xf32>
    %271 = tpu.matmul %270, %1, %cst_53 {dimension_numbers = #tpu.dot_dimension_numbers<[1], [0], [0], [1], [0, 0, 1, 1], [], []>} : vector<8x48xbf16>, vector<48x128xbf16>, vector<8x128xf32> -> vector<8x128xf32>
    %272 = vector.broadcast %3 : vector<1x128xf32> to vector<8x128xf32>
    %273 = arith.addf %271, %272 : vector<8x128xf32>
    %274 = math.tanh %273 : vector<8x128xf32>
    %275 = arith.negf %273 : vector<8x128xf32>
    %276 = math.exp %275 : vector<8x128xf32>
    %cst_54 = arith.constant 1.000000e+00 : f32
    %277 = vector.broadcast %cst_54 : f32 to vector<8x128xf32>
    %278 = arith.addf %277, %276 : vector<8x128xf32>
    %279 = arith.divf %277, %278 : vector<8x128xf32>
    %280 = arith.select %12, %274, %279 : vector<8x128xi1>, vector<8x128xf32>
    %281 = vector.extract_strided_slice %280 {offsets = [0, 0], sizes = [8, 32], strides = [1, 1]} : vector<8x128xf32> to vector<8x32xf32>
    %282 = vector.extract_strided_slice %280 {offsets = [0, 32], sizes = [8, 32], strides = [1, 1]} : vector<8x128xf32> to vector<8x32xf32>
    %283 = vector.extract_strided_slice %280 {offsets = [0, 64], sizes = [8, 32], strides = [1, 1]} : vector<8x128xf32> to vector<8x32xf32>
    %284 = vector.extract_strided_slice %280 {offsets = [0, 96], sizes = [8, 32], strides = [1, 1]} : vector<8x128xf32> to vector<8x32xf32>
    %285 = arith.mulf %282, %237 : vector<8x32xf32>
    %286 = arith.mulf %281, %283 : vector<8x32xf32>
    %287 = arith.addf %285, %286 : vector<8x32xf32>
    %288 = math.tanh %287 : vector<8x32xf32>
    %289 = arith.mulf %284, %288 : vector<8x32xf32>
    %290 = tpu.concatenate %289, %260 in 1 : vector<8x32xf32>, vector<8x32xf32> -> vector<8x64xf32>
    %291 = arith.truncf %290 : vector<8x64xf32> to vector<8x64xbf16>
    %cst_55 = arith.constant dense<0.000000e+00> : vector<8x128xf32>
    %292 = tpu.matmul %291, %2, %cst_55 {dimension_numbers = #tpu.dot_dimension_numbers<[1], [0], [0], [1], [0, 0, 1, 1], [], []>} : vector<8x64xbf16>, vector<64x128xbf16>, vector<8x128xf32> -> vector<8x128xf32>
    %293 = vector.broadcast %4 : vector<1x128xf32> to vector<8x128xf32>
    %294 = arith.addf %292, %293 : vector<8x128xf32>
    %295 = math.tanh %294 : vector<8x128xf32>
    %296 = arith.negf %294 : vector<8x128xf32>
    %297 = math.exp %296 : vector<8x128xf32>
    %cst_56 = arith.constant 1.000000e+00 : f32
    %298 = vector.broadcast %cst_56 : f32 to vector<8x128xf32>
    %299 = arith.addf %298, %297 : vector<8x128xf32>
    %300 = arith.divf %298, %299 : vector<8x128xf32>
    %301 = arith.select %12, %295, %300 : vector<8x128xi1>, vector<8x128xf32>
    %302 = vector.extract_strided_slice %301 {offsets = [0, 0], sizes = [8, 32], strides = [1, 1]} : vector<8x128xf32> to vector<8x32xf32>
    %303 = vector.extract_strided_slice %301 {offsets = [0, 32], sizes = [8, 32], strides = [1, 1]} : vector<8x128xf32> to vector<8x32xf32>
    %304 = vector.extract_strided_slice %301 {offsets = [0, 64], sizes = [8, 32], strides = [1, 1]} : vector<8x128xf32> to vector<8x32xf32>
    %305 = vector.extract_strided_slice %301 {offsets = [0, 96], sizes = [8, 32], strides = [1, 1]} : vector<8x128xf32> to vector<8x32xf32>
    %306 = arith.mulf %303, %258 : vector<8x32xf32>
    %307 = arith.mulf %302, %304 : vector<8x32xf32>
    %308 = arith.addf %306, %307 : vector<8x32xf32>
    %309 = math.tanh %308 : vector<8x32xf32>
    %310 = arith.mulf %305, %309 : vector<8x32xf32>
    %311 = arith.truncf %310 : vector<8x32xf32> to vector<8x32xbf16>
    %cst_57 = arith.constant dense<0.000000e+00> : vector<8x128xf32>
    %312 = tpu.matmul %311, %5, %cst_57 {dimension_numbers = #tpu.dot_dimension_numbers<[1], [0], [0], [1], [0, 0, 1, 1], [], []>} : vector<8x32xbf16>, vector<32x128xbf16>, vector<8x128xf32> -> vector<8x128xf32>
    %313 = vector.broadcast %6 : vector<1x128xf32> to vector<8x128xf32>
    %314 = arith.addf %312, %313 : vector<8x128xf32>
    %315 = vector.shape_cast %314 : vector<8x128xf32> to vector<8x1x128xf32>
    %c0_58 = arith.constant 0 : index
    %c5 = arith.constant 5 : index
    %c0_59 = arith.constant 0 : index
    %316 = vector.load %arg8[%c0_58, %c5, %c0_59] : memref<8x8x128xf32, #tpu.memory_space<vmem>>, vector<8x1x128xf32>
    tpu.vector_store %arg8[%c0_58, %c5, %c0_59], %315 {strides = array<i32>} : memref<8x8x128xf32, #tpu.memory_space<vmem>>, vector<8x1x128xf32>,
    %317 = vector.extract_strided_slice %0 {offsets = [0, 6, 0], sizes = [8, 1, 16], strides = [1, 1, 1]} : vector<8x8x16xf32> to vector<8x1x16xf32>
    %318 = vector.shape_cast %317 : vector<8x1x16xf32> to vector<8x16xf32>
    %319 = tpu.concatenate %318, %289 in 1 : vector<8x16xf32>, vector<8x32xf32> -> vector<8x48xf32>
    %320 = arith.truncf %319 : vector<8x48xf32> to vector<8x48xbf16>
    %cst_60 = arith.constant dense<0.000000e+00> : vector<8x128xf32>
    %321 = tpu.matmul %320, %1, %cst_60 {dimension_numbers = #tpu.dot_dimension_numbers<[1], [0], [0], [1], [0, 0, 1, 1], [], []>} : vector<8x48xbf16>, vector<48x128xbf16>, vector<8x128xf32> -> vector<8x128xf32>
    %322 = vector.broadcast %3 : vector<1x128xf32> to vector<8x128xf32>
    %323 = arith.addf %321, %322 : vector<8x128xf32>
    %324 = math.tanh %323 : vector<8x128xf32>
    %325 = arith.negf %323 : vector<8x128xf32>
    %326 = math.exp %325 : vector<8x128xf32>
    %cst_61 = arith.constant 1.000000e+00 : f32
    %327 = vector.broadcast %cst_61 : f32 to vector<8x128xf32>
    %328 = arith.addf %327, %326 : vector<8x128xf32>
    %329 = arith.divf %327, %328 : vector<8x128xf32>
    %330 = arith.select %12, %324, %329 : vector<8x128xi1>, vector<8x128xf32>
    %331 = vector.extract_strided_slice %330 {offsets = [0, 0], sizes = [8, 32], strides = [1, 1]} : vector<8x128xf32> to vector<8x32xf32>
    %332 = vector.extract_strided_slice %330 {offsets = [0, 32], sizes = [8, 32], strides = [1, 1]} : vector<8x128xf32> to vector<8x32xf32>
    %333 = vector.extract_strided_slice %330 {offsets = [0, 64], sizes = [8, 32], strides = [1, 1]} : vector<8x128xf32> to vector<8x32xf32>
    %334 = vector.extract_strided_slice %330 {offsets = [0, 96], sizes = [8, 32], strides = [1, 1]} : vector<8x128xf32> to vector<8x32xf32>
    %335 = arith.mulf %332, %287 : vector<8x32xf32>
    %336 = arith.mulf %331, %333 : vector<8x32xf32>
    %337 = arith.addf %335, %336 : vector<8x32xf32>
    %338 = math.tanh %337 : vector<8x32xf32>
    %339 = arith.mulf %334, %338 : vector<8x32xf32>
    %340 = tpu.concatenate %339, %310 in 1 : vector<8x32xf32>, vector<8x32xf32> -> vector<8x64xf32>
    %341 = arith.truncf %340 : vector<8x64xf32> to vector<8x64xbf16>
    %cst_62 = arith.constant dense<0.000000e+00> : vector<8x128xf32>
    %342 = tpu.matmul %341, %2, %cst_62 {dimension_numbers = #tpu.dot_dimension_numbers<[1], [0], [0], [1], [0, 0, 1, 1], [], []>} : vector<8x64xbf16>, vector<64x128xbf16>, vector<8x128xf32> -> vector<8x128xf32>
    %343 = vector.broadcast %4 : vector<1x128xf32> to vector<8x128xf32>
    %344 = arith.addf %342, %343 : vector<8x128xf32>
    %345 = math.tanh %344 : vector<8x128xf32>
    %346 = arith.negf %344 : vector<8x128xf32>
    %347 = math.exp %346 : vector<8x128xf32>
    %cst_63 = arith.constant 1.000000e+00 : f32
    %348 = vector.broadcast %cst_63 : f32 to vector<8x128xf32>
    %349 = arith.addf %348, %347 : vector<8x128xf32>
    %350 = arith.divf %348, %349 : vector<8x128xf32>
    %351 = arith.select %12, %345, %350 : vector<8x128xi1>, vector<8x128xf32>
    %352 = vector.extract_strided_slice %351 {offsets = [0, 0], sizes = [8, 32], strides = [1, 1]} : vector<8x128xf32> to vector<8x32xf32>
    %353 = vector.extract_strided_slice %351 {offsets = [0, 32], sizes = [8, 32], strides = [1, 1]} : vector<8x128xf32> to vector<8x32xf32>
    %354 = vector.extract_strided_slice %351 {offsets = [0, 64], sizes = [8, 32], strides = [1, 1]} : vector<8x128xf32> to vector<8x32xf32>
    %355 = vector.extract_strided_slice %351 {offsets = [0, 96], sizes = [8, 32], strides = [1, 1]} : vector<8x128xf32> to vector<8x32xf32>
    %356 = arith.mulf %353, %308 : vector<8x32xf32>
    %357 = arith.mulf %352, %354 : vector<8x32xf32>
    %358 = arith.addf %356, %357 : vector<8x32xf32>
    %359 = math.tanh %358 : vector<8x32xf32>
    %360 = arith.mulf %355, %359 : vector<8x32xf32>
    %361 = arith.truncf %360 : vector<8x32xf32> to vector<8x32xbf16>
    %cst_64 = arith.constant dense<0.000000e+00> : vector<8x128xf32>
    %362 = tpu.matmul %361, %5, %cst_64 {dimension_numbers = #tpu.dot_dimension_numbers<[1], [0], [0], [1], [0, 0, 1, 1], [], []>} : vector<8x32xbf16>, vector<32x128xbf16>, vector<8x128xf32> -> vector<8x128xf32>
    %363 = vector.broadcast %6 : vector<1x128xf32> to vector<8x128xf32>
    %364 = arith.addf %362, %363 : vector<8x128xf32>
    %365 = vector.shape_cast %364 : vector<8x128xf32> to vector<8x1x128xf32>
    %c0_65 = arith.constant 0 : index
    %c6 = arith.constant 6 : index
    %c0_66 = arith.constant 0 : index
    %366 = vector.load %arg8[%c0_65, %c6, %c0_66] : memref<8x8x128xf32, #tpu.memory_space<vmem>>, vector<8x1x128xf32>
    tpu.vector_store %arg8[%c0_65, %c6, %c0_66], %365 {strides = array<i32>} : memref<8x8x128xf32, #tpu.memory_space<vmem>>, vector<8x1x128xf32>,
    %367 = vector.extract_strided_slice %0 {offsets = [0, 7, 0], sizes = [8, 1, 16], strides = [1, 1, 1]} : vector<8x8x16xf32> to vector<8x1x16xf32>
    %368 = vector.shape_cast %367 : vector<8x1x16xf32> to vector<8x16xf32>
    %369 = tpu.concatenate %368, %339 in 1 : vector<8x16xf32>, vector<8x32xf32> -> vector<8x48xf32>
    %370 = arith.truncf %369 : vector<8x48xf32> to vector<8x48xbf16>
    %cst_67 = arith.constant dense<0.000000e+00> : vector<8x128xf32>
    %371 = tpu.matmul %370, %1, %cst_67 {dimension_numbers = #tpu.dot_dimension_numbers<[1], [0], [0], [1], [0, 0, 1, 1], [], []>} : vector<8x48xbf16>, vector<48x128xbf16>, vector<8x128xf32> -> vector<8x128xf32>
    %372 = vector.broadcast %3 : vector<1x128xf32> to vector<8x128xf32>
    %373 = arith.addf %371, %372 : vector<8x128xf32>
    %374 = math.tanh %373 : vector<8x128xf32>
    %375 = arith.negf %373 : vector<8x128xf32>
    %376 = math.exp %375 : vector<8x128xf32>
    %cst_68 = arith.constant 1.000000e+00 : f32
    %377 = vector.broadcast %cst_68 : f32 to vector<8x128xf32>
    %378 = arith.addf %377, %376 : vector<8x128xf32>
    %379 = arith.divf %377, %378 : vector<8x128xf32>
    %380 = arith.select %12, %374, %379 : vector<8x128xi1>, vector<8x128xf32>
    %381 = vector.extract_strided_slice %380 {offsets = [0, 0], sizes = [8, 32], strides = [1, 1]} : vector<8x128xf32> to vector<8x32xf32>
    %382 = vector.extract_strided_slice %380 {offsets = [0, 32], sizes = [8, 32], strides = [1, 1]} : vector<8x128xf32> to vector<8x32xf32>
    %383 = vector.extract_strided_slice %380 {offsets = [0, 64], sizes = [8, 32], strides = [1, 1]} : vector<8x128xf32> to vector<8x32xf32>
    %384 = vector.extract_strided_slice %380 {offsets = [0, 96], sizes = [8, 32], strides = [1, 1]} : vector<8x128xf32> to vector<8x32xf32>
    %385 = arith.mulf %382, %337 : vector<8x32xf32>
    %386 = arith.mulf %381, %383 : vector<8x32xf32>
    %387 = arith.addf %385, %386 : vector<8x32xf32>
    %388 = math.tanh %387 : vector<8x32xf32>
    %389 = arith.mulf %384, %388 : vector<8x32xf32>
    %390 = tpu.concatenate %389, %360 in 1 : vector<8x32xf32>, vector<8x32xf32> -> vector<8x64xf32>
    %391 = arith.truncf %390 : vector<8x64xf32> to vector<8x64xbf16>
    %cst_69 = arith.constant dense<0.000000e+00> : vector<8x128xf32>
    %392 = tpu.matmul %391, %2, %cst_69 {dimension_numbers = #tpu.dot_dimension_numbers<[1], [0], [0], [1], [0, 0, 1, 1], [], []>} : vector<8x64xbf16>, vector<64x128xbf16>, vector<8x128xf32> -> vector<8x128xf32>
    %393 = vector.broadcast %4 : vector<1x128xf32> to vector<8x128xf32>
    %394 = arith.addf %392, %393 : vector<8x128xf32>
    %395 = math.tanh %394 : vector<8x128xf32>
    %396 = arith.negf %394 : vector<8x128xf32>
    %397 = math.exp %396 : vector<8x128xf32>
    %cst_70 = arith.constant 1.000000e+00 : f32
    %398 = vector.broadcast %cst_70 : f32 to vector<8x128xf32>
    %399 = arith.addf %398, %397 : vector<8x128xf32>
    %400 = arith.divf %398, %399 : vector<8x128xf32>
    %401 = arith.select %12, %395, %400 : vector<8x128xi1>, vector<8x128xf32>
    %402 = vector.extract_strided_slice %401 {offsets = [0, 0], sizes = [8, 32], strides = [1, 1]} : vector<8x128xf32> to vector<8x32xf32>
    %403 = vector.extract_strided_slice %401 {offsets = [0, 32], sizes = [8, 32], strides = [1, 1]} : vector<8x128xf32> to vector<8x32xf32>
    %404 = vector.extract_strided_slice %401 {offsets = [0, 64], sizes = [8, 32], strides = [1, 1]} : vector<8x128xf32> to vector<8x32xf32>
    %405 = vector.extract_strided_slice %401 {offsets = [0, 96], sizes = [8, 32], strides = [1, 1]} : vector<8x128xf32> to vector<8x32xf32>
    %406 = arith.mulf %403, %358 : vector<8x32xf32>
    %407 = arith.mulf %402, %404 : vector<8x32xf32>
    %408 = arith.addf %406, %407 : vector<8x32xf32>
    %409 = math.tanh %408 : vector<8x32xf32>
    %410 = arith.mulf %405, %409 : vector<8x32xf32>
    %411 = arith.truncf %410 : vector<8x32xf32> to vector<8x32xbf16>
    %cst_71 = arith.constant dense<0.000000e+00> : vector<8x128xf32>
    %412 = tpu.matmul %411, %5, %cst_71 {dimension_numbers = #tpu.dot_dimension_numbers<[1], [0], [0], [1], [0, 0, 1, 1], [], []>} : vector<8x32xbf16>, vector<32x128xbf16>, vector<8x128xf32> -> vector<8x128xf32>
    %413 = vector.broadcast %6 : vector<1x128xf32> to vector<8x128xf32>
    %414 = arith.addf %412, %413 : vector<8x128xf32>
    %415 = vector.shape_cast %414 : vector<8x128xf32> to vector<8x1x128xf32>
    %c0_72 = arith.constant 0 : index
    %c7 = arith.constant 7 : index
    %c0_73 = arith.constant 0 : index
    %416 = vector.load %arg8[%c0_72, %c7, %c0_73] : memref<8x8x128xf32, #tpu.memory_space<vmem>>, vector<8x1x128xf32>
    tpu.vector_store %arg8[%c0_72, %c7, %c0_73], %415 {strides = array<i32>} : memref<8x8x128xf32, #tpu.memory_space<vmem>>, vector<8x1x128xf32>,
    return
  }
  func.func @transform_0(%arg0: i32) -> (i32, i32, i32) {
    %c0_i32 = arith.constant 0 : i32
    %c0_i32_0 = arith.constant 0 : i32
    %c0_i32_1 = arith.constant 0 : i32
    %c0_i32_2 = arith.constant 0 : i32
    return %c0_i32, %c0_i32_0, %c0_i32_1 : i32, i32, i32
  }
  func.func @transform_1(%arg0: i32) -> (i32, i32) {
    %c0_i32 = arith.constant 0 : i32
    %c0_i32_0 = arith.constant 0 : i32
    %c0_i32_1 = arith.constant 0 : i32
    return %c0_i32, %c0_i32_0 : i32, i32
  }
  func.func @transform_2(%arg0: i32) -> (i32, i32) {
    %c0_i32 = arith.constant 0 : i32
    %c0_i32_0 = arith.constant 0 : i32
    %c0_i32_1 = arith.constant 0 : i32
    return %c0_i32, %c0_i32_0 : i32, i32
  }
  func.func @transform_3(%arg0: i32) -> (i32, i32) {
    %c0_i32 = arith.constant 0 : i32
    %c0_i32_0 = arith.constant 0 : i32
    %c0_i32_1 = arith.constant 0 : i32
    return %c0_i32, %c0_i32_0 : i32, i32
  }
  func.func @transform_4(%arg0: i32) -> (i32, i32) {
    %c0_i32 = arith.constant 0 : i32
    %c0_i32_0 = arith.constant 0 : i32
    %c0_i32_1 = arith.constant 0 : i32
    return %c0_i32, %c0_i32_0 : i32, i32
  }
  func.func @transform_5(%arg0: i32) -> (i32, i32) {
    %c0_i32 = arith.constant 0 : i32
    %c0_i32_0 = arith.constant 0 : i32
    %c0_i32_1 = arith.constant 0 : i32
    return %c0_i32, %c0_i32_0 : i32, i32
  }
  func.func @transform_6(%arg0: i32) -> (i32, i32) {
    %c0_i32 = arith.constant 0 : i32
    %c0_i32_0 = arith.constant 0 : i32
    %c0_i32_1 = arith.constant 0 : i32
    return %c0_i32, %c0_i32_0 : i32, i32
  }
  func.func @transform_7(%arg0: i32) -> (i32, i32, i32) {
    %c0_i32 = arith.constant 0 : i32
    %c0_i32_0 = arith.constant 0 : i32
    %c0_i32_1 = arith.constant 0 : i32
    %c0_i32_2 = arith.constant 0 : i32
    return %c0_i32, %c0_i32_0, %c0_i32_1 : i32, i32, i32
  }
}

</mosaic_0001>

<llo_original>
// kernel: lstm_model_forward.1
$region0: #{lstm_model_forward.1}
  #allocation0 [shape = 'u32[]', space=smem, size = 0x4, offset = 0x4, fixed_abs, tag = 'smem constant byte address 0x4 - core index']
  #allocation1 [shape = 'u32[144,128]{1,0:T(1,128)}', space=vmem, size = 0x12000, scoped, tag = 'internal scratch']
  %s0 = inlined_call_operand.vmem [shape: f32[8,8,16], index: 0, kind: input, shape index: {}]
  %s1 = inlined_call_operand.vmem [shape: bf16[48,128], index: 1, kind: input, shape index: {}]
  %s2 = inlined_call_operand.vmem [shape: f32[1,128], index: 2, kind: input, shape index: {}]
  %s3 = inlined_call_operand.vmem [shape: bf16[64,128], index: 3, kind: input, shape index: {}]
  %s4 = inlined_call_operand.vmem [shape: f32[1,128], index: 4, kind: input, shape index: {}]
  %s5 = inlined_call_operand.vmem [shape: bf16[32,128], index: 5, kind: input, shape index: {}]
  %s6 = inlined_call_operand.vmem [shape: f32[1,128], index: 6, kind: input, shape index: {}]
  %s7 = inlined_call_operand.hbm [shape: f32[8,8,128], index: 7, kind: output, shape index: {}]
  %s8 = sld [smem:[#allocation0]]
  $region38: #{lstm_model_forward.1} parent=0
    _
  %s10 = ssub.s32 1, %s8
  %s11 = scalar_select 0, %s10, %s8
  $region1: #{lstm_model_forward.1} parent=0
    #allocation2 [shape = 'u8[32768]{0}', space=vmem, size = 0x8000, scoped, tag = 'output window, operand 0, single buffered']
    #allocation3 [shape = 's32[1]{0}', space=sflag, size = 0x4, scoped, tag = 'scoped memory for lstm_model_forward.1']
    %12 = vsyncpa [#allocation3], 0
    // Predicated region
    $region2: #{lstm_model_forward.1} parent=1 // pred_check
      _
    $region3: #{lstm_model_forward.1} parent=1 // pred_check_branch
      %14 = sbr.rel (0) target = $region5
    $region4: #{lstm_model_forward.1} parent=1 // pred_region
      _
    $region5: #{lstm_model_forward.1} parent=1 // pred_fallthru
      _
    // Predicated region
    $region6: #{lstm_model_forward.1} parent=1 // pred_check
      _
    $region7: #{lstm_model_forward.1} parent=1 // pred_check_branch
      %16 = sbr.rel (0) target = $region9
    $region8: #{lstm_model_forward.1} parent=1 // pred_region
      _
    $region9: #{lstm_model_forward.1} parent=1 // pred_fallthru
      _
    // Predicated region
    $region10: #{lstm_model_forward.1} parent=1 // pred_check
      _
    $region11: #{lstm_model_forward.1} parent=1 // pred_check_branch
      %18 = sbr.rel (0) target = $region13
    $region12: #{lstm_model_forward.1} parent=1 // pred_region
      _
    $region13: #{lstm_model_forward.1} parent=1 // pred_fallthru
      _
    // Predicated region
    $region14: #{lstm_model_forward.1} parent=1 // pred_check
      _
    $region15: #{lstm_model_forward.1} parent=1 // pred_check_branch
      %20 = sbr.rel (0) target = $region17
    $region16: #{lstm_model_forward.1} parent=1 // pred_region
      _
    $region17: #{lstm_model_forward.1} parent=1 // pred_fallthru
      _
    // Predicated region
    $region18: #{lstm_model_forward.1} parent=1 // pred_check
      _
    $region19: #{lstm_model_forward.1} parent=1 // pred_check_branch
      %22 = sbr.rel (0) target = $region21
    $region20: #{lstm_model_forward.1} parent=1 // pred_region
      _
    $region21: #{lstm_model_forward.1} parent=1 // pred_fallthru
      _
    // Predicated region
    $region22: #{lstm_model_forward.1} parent=1 // pred_check
      _
    $region23: #{lstm_model_forward.1} parent=1 // pred_check_branch
      %24 = sbr.rel (0) target = $region25
    $region24: #{lstm_model_forward.1} parent=1 // pred_region
      _
    $region25: #{lstm_model_forward.1} parent=1 // pred_fallthru
      _
    // Predicated region
    $region26: #{lstm_model_forward.1} parent=1 // pred_check
      _
    $region27: #{lstm_model_forward.1} parent=1 // pred_check_branch
      %26 = sbr.rel (0) target = $region29
    $region28: #{lstm_model_forward.1} parent=1 // pred_region
      _
    $region29: #{lstm_model_forward.1} parent=1 // pred_fallthru
      _
    %v28 = vld [vmem:[%s0] sm:$0xff]
    %v29 = vld [vmem:[%s0 + $0x8] sm:$0xff]
    %v30 = vld [vmem:[%s0 + $0x10] sm:$0xff]
    %v31 = vld [vmem:[%s0 + $0x18] sm:$0xff]
    %v32 = vld [vmem:[%s0 + $0x20] sm:$0xff]
    %v33 = vld [vmem:[%s0 + $0x28] sm:$0xff]
    %v34 = vld [vmem:[%s0 + $0x30] sm:$0xff]
    %v35 = vld [vmem:[%s0 + $0x38] sm:$0xff]
    %v36 = vld [vmem:[%s1] sm:$0xf]
    %v37 = vld [vmem:[%s1 + $0x4] sm:$0xf]
    %v38 = vld [vmem:[%s1 + $0x8] sm:$0xf]
    %v39 = vld [vmem:[%s1 + $0xc] sm:$0xf]
    %v40 = vld [vmem:[%s1 + $0x10] sm:$0xf]
    %v41 = vld [vmem:[%s1 + $0x14] sm:$0xf]
    %v42 = vld [vmem:[%s3] sm:$0xf]
    %v43 = vld [vmem:[%s3 + $0x4] sm:$0xf]
    %v44 = vld [vmem:[%s3 + $0x8] sm:$0xf]
    %v45 = vld [vmem:[%s3 + $0xc] sm:$0xf]
    %v46 = vld [vmem:[%s3 + $0x10] sm:$0xf]
    %v47 = vld [vmem:[%s3 + $0x14] sm:$0xf]
    %v48 = vld [vmem:[%s3 + $0x18] sm:$0xf]
    %v49 = vld [vmem:[%s3 + $0x1c] sm:$0xf]
    %v50 = vld [vmem:[%s2] sm:$0x1]
    %v51 = vld [vmem:[%s4] sm:$0x1]
    %v52 = vld [vmem:[%s5] sm:$0xf]
    %v53 = vld [vmem:[%s5 + $0x4] sm:$0xf]
    %v54 = vld [vmem:[%s5 + $0x8] sm:$0xf]
    %v55 = vld [vmem:[%s5 + $0xc] sm:$0xf]
    %v56 = vld [vmem:[%s6] sm:$0x1]
    %v57 = vlaneseq
    %v58 = vand.u32 %v57, 127
    %vm59 = vcmp.ge.s32.totalorder %v58, 64
    %vm60 = vcmp.lt.s32.totalorder %v58, 96
    %vm61 = vmand %vm59, %vm60
    %v70 = vrot.slane %v29, 7
    %vm71 = vcmask 1041409
    %v72 = vsel %vm71, %v70, %v28
    %v73 = vrot.slane %v30, 6
    %vm74 = vcmask 1042434
    %v75 = vsel %vm74, %v73, %v72
    %v76 = vrot.slane %v31, 5
    %vm77 = vcmask 1043459
    %v78 = vsel %vm77, %v76, %v75
    %v79 = vrot.slane %v32, 4
    %vm80 = vcmask 1044484
    %v81 = vsel %vm80, %v79, %v78
    %v82 = vrot.slane %v33, 3
    %vm83 = vcmask 1045509
    %v84 = vsel %vm83, %v82, %v81
    %v85 = vrot.slane %v34, 2
    %vm86 = vcmask 1046534
    %v87 = vsel %vm86, %v85, %v84
    %v88 = vrot.slane %v35, 1
    %vm89 = vcmask 1047559
    %v90 = vsel %vm89, %v88, %v87
    %vm92 = vcmask 130048
    %v93 = vsel %vm92, %v90, 0.0
    %v94 = vpack.c.bf16 %v93, %v93
    %v96 = vlaneseq
    %v97 = vshrl.u32 %v96, 7
    %v98 = vsub.s32 0, %v97
    %v99 = vrot.slane %v50, %v98
    %v107 = vunpack.c.l.b16 %v36
    %v108 = vunpack.c.l.b16 %v37
    %v109 = vunpack.c.l.b16 %v38
    %v110 = vunpack.c.l.b16 %v39
    %v111 = vunpack.c.l.b16 %v40
    %v112 = vunpack.c.l.b16 %v41
    %v113 = vpack.c.b16 %v108, %v107
    %v114 = vpack.c.b16 %v110, %v109
    %v115 = vpack.c.b16 %v112, %v111
    %vm119 = vcmask 392192
    %v121 = vsel %vm119, %v94, 0
    %123 = vmatprep.subr.bf16.mxu0 0
    %124 = vmatpush1.bf16.msra.mxu0 %v113
    %125 = vmatprep.subr.bf16.mxu0 0
    %126 = vmatpush1.bf16.msra.mxu0 %v114
    %127 = vmatprep.subr.bf16.mxu0 0
    %128 = vmatpush1.bf16.msra.mxu0 %v115
    %129 = vmatprep.subr.bf16.mxu0 0
    %130 = vmatpush1.bf16.msra.mxu0 0
    %131 = vmatprep.subr.bf16.mxu0 0
    %132 = vmatpush1.bf16.msra.mxu0 0
    %133 = vmatprep.subr.bf16.mxu0 0
    %134 = vmatpush1.bf16.msra.mxu0 0
    %135 = vmatprep.subr.bf16.mxu0 0
    %136 = vmatpush1.bf16.msra.mxu0 0
    %137 = vmatprep.subr.bf16.mxu0 0
    %138 = vmatpush1.bf16.msra.mxu0 0
    %139 = vmatprep.subr.bf16.mxu0 0
    %140 = vmatpush1.bf16.msra.mxu0 0
    %141 = vmatprep.subr.bf16.mxu0 0
    %142 = vmatpush1.bf16.msra.mxu0 0
    %143 = vmatprep.subr.bf16.mxu0 0
    %144 = vmatpush1.bf16.msra.mxu0 0
    %145 = vmatprep.subr.bf16.mxu0 0
    %146 = vmatpush1.bf16.msra.mxu0 0
    %147 = vmatprep.subr.bf16.mxu0 0
    %148 = vmatpush1.bf16.msra.mxu0 0
    %149 = vmatprep.subr.bf16.mxu0 0
    %150 = vmatpush1.bf16.msra.mxu0 0
    %151 = vmatprep.subr.bf16.mxu0 0
    %152 = vmatpush1.bf16.msra.mxu0 0
    %153 = vmatprep.subr.bf16.mxu0 0
    %154 = vmatpush1.bf16.msra.mxu0 0
    %155 = vmatprep.mubr.bf16.mxu0 0
    %156 = vmatmul.mubr.bf16.gmra.mrb[0].mxu0 %v121
    %v157 = vpop.f32.mrb[0].mxu0
    %v158 = vadd.f32 %v99, %v157
    %v159 = vpop.f32.mrb[0].mxu0
    %v160 = vpop.f32.mrb[0].mxu0
    %v161 = vpop.f32.mrb[0].mxu0
    %162 = vdwg.mxu0
    %v163 = vtanh.pop %v158
    %v164 = vxor.u32 %v158, 2147483648
    %v165 = vmul.f32 %v164, 1.442695
    %v166 = vpow.pop %v165
    %v167 = vadd.f32 %v166, 1.0
    %v168 = vrcp.pop %v167
    %v169 = vmul.f32 1.0, %v168
    %v170 = vsel %vm61, %v163, %v169
    %v171 = vmul.f32 %v170, 0.0
    %173 = vrot.lane.b32.xlu0 %v170, 64
    %v174 = vpop.permute.xlu0 %173
    %v176 = vmul.f32 %v170, %v174
    %178 = vrot.lane.b32.xlu0 %v176, 32
    %v179 = vpop.permute.xlu0 %178
    %v181 = vadd.f32 %v171, %v179
    %v182 = vtanh.pop %v181
    %184 = vrot.lane.b32.xlu0 %v182, 64
    %v185 = vpop.permute.xlu0 %184
    %v187 = vmul.f32 %v170, %v185
    %189 = vrot.lane.b32.xlu0 %v187, 32
    %v190 = vpop.permute.xlu0 %189
    %vm192 = vcmask 261120
    %v193 = vsel %vm192, %v190, 0.0
    %v194 = vpack.c.bf16 %v193, %v193
    %v196 = vlaneseq
    %v197 = vshrl.u32 %v196, 7
    %v198 = vsub.s32 0, %v197
    %v199 = vrot.slane %v51, %v198
    %v209 = vunpack.c.l.b16 %v42
    %v210 = vunpack.c.l.b16 %v43
    %v211 = vunpack.c.l.b16 %v44
    %v212 = vunpack.c.l.b16 %v45
    %v213 = vunpack.c.l.b16 %v46
    %v214 = vunpack.c.l.b16 %v47
    %v215 = vunpack.c.l.b16 %v48
    %v216 = vunpack.c.l.b16 %v49
    %v217 = vpack.c.b16 %v210, %v209
    %v218 = vpack.c.b16 %v212, %v211
    %v219 = vpack.c.b16 %v214, %v213
    %v220 = vpack.c.b16 %v216, %v215
    %vm225 = vcmask 523264
    %v227 = vsel %vm225, %v194, 0
    %229 = vmatprep.subr.bf16.mxu0 0
    %230 = vmatpush1.bf16.msra.mxu0 %v217
    %231 = vmatprep.subr.bf16.mxu0 0
    %232 = vmatpush1.bf16.msra.mxu0 %v218
    %233 = vmatprep.subr.bf16.mxu0 0
    %234 = vmatpush1.bf16.msra.mxu0 %v219
    %235 = vmatprep.subr.bf16.mxu0 0
    %236 = vmatpush1.bf16.msra.mxu0 %v220
    %237 = vmatprep.subr.bf16.mxu0 0
    %238 = vmatpush1.bf16.msra.mxu0 0
    %239 = vmatprep.subr.bf16.mxu0 0
    %240 = vmatpush1.bf16.msra.mxu0 0
    %241 = vmatprep.subr.bf16.mxu0 0
    %242 = vmatpush1.bf16.msra.mxu0 0
    %243 = vmatprep.subr.bf16.mxu0 0
    %244 = vmatpush1.bf16.msra.mxu0 0
    %245 = vmatprep.subr.bf16.mxu0 0
    %246 = vmatpush1.bf16.msra.mxu0 0
    %247 = vmatprep.subr.bf16.mxu0 0
    %248 = vmatpush1.bf16.msra.mxu0 0
    %249 = vmatprep.subr.bf16.mxu0 0
    %250 = vmatpush1.bf16.msra.mxu0 0
    %251 = vmatprep.subr.bf16.mxu0 0
    %252 = vmatpush1.bf16.msra.mxu0 0
    %253 = vmatprep.subr.bf16.mxu0 0
    %254 = vmatpush1.bf16.msra.mxu0 0
    %255 = vmatprep.subr.bf16.mxu0 0
    %256 = vmatpush1.bf16.msra.mxu0 0
    %257 = vmatprep.subr.bf16.mxu0 0
    %258 = vmatpush1.bf16.msra.mxu0 0
    %259 = vmatprep.subr.bf16.mxu0 0
    %260 = vmatpush1.bf16.msra.mxu0 0
    %261 = vmatprep.mubr.bf16.mxu0 0
    %262 = vmatmul.mubr.bf16.gmra.mrb[0].mxu0 %v227
    %v263 = vpop.f32.mrb[0].mxu0
    %v264 = vadd.f32 %v199, %v263
    %v265 = vpop.f32.mrb[0].mxu0
    %v266 = vpop.f32.mrb[0].mxu0
    %v267 = vpop.f32.mrb[0].mxu0
    %268 = vdwg.mxu0
    %v269 = vtanh.pop %v264
    %v270 = vxor.u32 %v264, 2147483648
    %v271 = vmul.f32 %v270, 1.442695
    %v272 = vpow.pop %v271
    %v273 = vadd.f32 %v272, 1.0
    %v274 = vrcp.pop %v273
    %v275 = vmul.f32 1.0, %v274
    %v276 = vsel %vm61, %v269, %v275
    %v277 = vmul.f32 %v276, 0.0
    %279 = vrot.lane.b32.xlu0 %v276, 64
    %v280 = vpop.permute.xlu0 %279
    %v282 = vmul.f32 %v276, %v280
    %284 = vrot.lane.b32.xlu0 %v282, 32
    %v285 = vpop.permute.xlu0 %284
    %v287 = vadd.f32 %v277, %v285
    %v288 = vtanh.pop %v287
    %290 = vrot.lane.b32.xlu0 %v288, 64
    %v291 = vpop.permute.xlu0 %290
    %v293 = vmul.f32 %v276, %v291
    %v294 = vpack.c.bf16 %v293, %v293
    %v296 = vlaneseq
    %v297 = vshrl.u32 %v296, 7
    %v298 = vsub.s32 0, %v297
    %v299 = vrot.slane %v56, %v298
    %302 = vrot.lane.b32.xlu0 %v294, 32
    %v303 = vpop.permute.xlu0 %302
    %v308 = vunpack.c.l.b16 %v52
    %v309 = vunpack.c.l.b16 %v53
    %v310 = vunpack.c.l.b16 %v54
    %v311 = vunpack.c.l.b16 %v55
    %v312 = vpack.c.b16 %v309, %v308
    %v313 = vpack.c.b16 %v311, %v310
    %v317 = vsel %vm192, %v303, 0
    %319 = vmatprep.subr.bf16.mxu0 0
    %320 = vmatpush1.bf16.msra.mxu0 %v312
    %321 = vmatprep.subr.bf16.mxu0 0
    %322 = vmatpush1.bf16.msra.mxu0 %v313
    %323 = vmatprep.subr.bf16.mxu0 0
    %324 = vmatpush1.bf16.msra.mxu0 0
    %325 = vmatprep.subr.bf16.mxu0 0
    %326 = vmatpush1.bf16.msra.mxu0 0
    %327 = vmatprep.subr.bf16.mxu0 0
    %328 = vmatpush1.bf16.msra.mxu0 0
    %329 = vmatprep.subr.bf16.mxu0 0
    %330 = vmatpush1.bf16.msra.mxu0 0
    %331 = vmatprep.subr.bf16.mxu0 0
    %332 = vmatpush1.bf16.msra.mxu0 0
    %333 = vmatprep.subr.bf16.mxu0 0
    %334 = vmatpush1.bf16.msra.mxu0 0
    %335 = vmatprep.subr.bf16.mxu0 0
    %336 = vmatpush1.bf16.msra.mxu0 0
    %337 = vmatprep.subr.bf16.mxu0 0
    %338 = vmatpush1.bf16.msra.mxu0 0
    %339 = vmatprep.subr.bf16.mxu0 0
    %340 = vmatpush1.bf16.msra.mxu0 0
    %341 = vmatprep.subr.bf16.mxu0 0
    %342 = vmatpush1.bf16.msra.mxu0 0
    %343 = vmatprep.subr.bf16.mxu0 0
    %344 = vmatpush1.bf16.msra.mxu0 0
    %345 = vmatprep.subr.bf16.mxu0 0
    %346 = vmatpush1.bf16.msra.mxu0 0
    %347 = vmatprep.subr.bf16.mxu0 0
    %348 = vmatpush1.bf16.msra.mxu0 0
    %349 = vmatprep.subr.bf16.mxu0 0
    %350 = vmatpush1.bf16.msra.mxu0 0
    %351 = vmatprep.mubr.bf16.mxu0 0
    %352 = vmatmul.mubr.bf16.gmra.mrb[0].mxu0 %v317
    %v353 = vpop.f32.mrb[0].mxu0
    %v354 = vadd.f32 %v299, %v353
    %v355 = vpop.f32.mrb[0].mxu0
    %v356 = vpop.f32.mrb[0].mxu0
    %v357 = vpop.f32.mrb[0].mxu0
    %358 = vdwg.mxu0
    %v360 = vcombine.high %v354, %v354
    %v362 = vunpack.c.l.s4 1966171168
    %v363 = vunpack.c.0.s8 %v362
    %v364 = vlaneseq
    %v365 = vshrl.u32 %v364, 7
    %v366 = vsub.s32 %v363, %v365
    %v367 = vrot.slane %v354, %v366
    %v369 = vunpack.c.l.s4 1966171168
    %v370 = vunpack.c.0.s8 %v369
    %v371 = vlaneseq
    %v372 = vshrl.u32 %v371, 7
    %v373 = vsub.s32 %v370, %v372
    %v374 = vrot.slane %v360, %v373
    %v375 = vcombine.high %v367, %v367
    %v376 = vcombine.high %v374, %v374
    %v378 = vunpack.c.l.s4 1966171168
    %v379 = vunpack.c.0.s8 %v378
    %v380 = vlaneseq
    %v381 = vshrl.u32 %v380, 7
    %v382 = vsub.s32 %v379, %v381
    %v383 = vrot.slane %v367, %v382
    %v385 = vunpack.c.l.s4 1966171168
    %v386 = vunpack.c.0.s8 %v385
    %v387 = vlaneseq
    %v388 = vshrl.u32 %v387, 7
    %v389 = vsub.s32 %v386, %v388
    %v390 = vrot.slane %v374, %v389
    %v392 = vunpack.c.l.s4 1966171168
    %v393 = vunpack.c.0.s8 %v392
    %v394 = vlaneseq
    %v395 = vshrl.u32 %v394, 7
    %v396 = vsub.s32 %v393, %v395
    %v397 = vrot.slane %v375, %v396
    %v399 = vunpack.c.l.s4 1966171168
    %v400 = vunpack.c.0.s8 %v399
    %v401 = vlaneseq
    %v402 = vshrl.u32 %v401, 7
    %v403 = vsub.s32 %v400, %v402
    %v404 = vrot.slane %v376, %v403
    %v405 = vcombine.high %v383, %v383
    %v406 = vcombine.high %v390, %v390
    %v407 = vcombine.high %v397, %v397
    %v408 = vcombine.high %v404, %v404
    %417 = vst [vmem:[#allocation2] sm:$0x1] %v383
    %418 = vst [vmem:[#allocation2 + $0x8] sm:$0x1] %v397
    %419 = vst [vmem:[#allocation2 + $0x10] sm:$0x1] %v405
    %420 = vst [vmem:[#allocation2 + $0x18] sm:$0x1] %v407
    %421 = vst [vmem:[#allocation2 + $0x20] sm:$0x1] %v390
    %422 = vst [vmem:[#allocation2 + $0x28] sm:$0x1] %v404
    %423 = vst [vmem:[#allocation2 + $0x30] sm:$0x1] %v406
    %424 = vst [vmem:[#allocation2 + $0x38] sm:$0x1] %v408
    %v425 = vsel %vm74, %v70, %v28
    %v426 = vsel %vm77, %v73, %v425
    %v427 = vsel %vm80, %v76, %v426
    %v428 = vsel %vm83, %v79, %v427
    %v429 = vsel %vm86, %v82, %v428
    %v430 = vsel %vm89, %v85, %v429
    %v433 = vrot.slane %v187, 7
    %434 = vrot.lane.b32.xlu0 %v433, 48
    %v435 = vpop.permute.xlu0 %434
    %v437 = vsel %vm92, %v430, %v435
    %v438 = vsel %vm92, %v88, %v435
    %v439 = vpack.c.bf16 %v438, %v437
    %v441 = vshrl.u32 %v439, 16
    %v443 = vshll.u32 %v439, 16
    %v445 = vrot.slane %v443, 1
    %v446 = vor.u32 %v441, %v445
    %v448 = vsel %vm119, %v446, 0
    %450 = vmatprep.subr.bf16.mxu0 0
    %451 = vmatpush1.bf16.msra.mxu0 %v113
    %452 = vmatprep.subr.bf16.mxu0 0
    %453 = vmatpush1.bf16.msra.mxu0 %v114
    %454 = vmatprep.subr.bf16.mxu0 0
    %455 = vmatpush1.bf16.msra.mxu0 %v115
    %456 = vmatprep.subr.bf16.mxu0 0
    %457 = vmatpush1.bf16.msra.mxu0 0
    %458 = vmatprep.subr.bf16.mxu0 0
    %459 = vmatpush1.bf16.msra.mxu0 0
    %460 = vmatprep.subr.bf16.mxu0 0
    %461 = vmatpush1.bf16.msra.mxu0 0
    %462 = vmatprep.subr.bf16.mxu0 0
    %463 = vmatpush1.bf16.msra.mxu0 0
    %464 = vmatprep.subr.bf16.mxu0 0
    %465 = vmatpush1.bf16.msra.mxu0 0
    %466 = vmatprep.subr.bf16.mxu0 0
    %467 = vmatpush1.bf16.msra.mxu0 0
    %468 = vmatprep.subr.bf16.mxu0 0
    %469 = vmatpush1.bf16.msra.mxu0 0
    %470 = vmatprep.subr.bf16.mxu0 0
    %471 = vmatpush1.bf16.msra.mxu0 0
    %472 = vmatprep.subr.bf16.mxu0 0
    %473 = vmatpush1.bf16.msra.mxu0 0
    %474 = vmatprep.subr.bf16.mxu0 0
    %475 = vmatpush1.bf16.msra.mxu0 0
    %476 = vmatprep.subr.bf16.mxu0 0
    %477 = vmatpush1.bf16.msra.mxu0 0
    %478 = vmatprep.subr.bf16.mxu0 0
    %479 = vmatpush1.bf16.msra.mxu0 0
    %480 = vmatprep.subr.bf16.mxu0 0
    %481 = vmatpush1.bf16.msra.mxu0 0
    %482 = vmatprep.mubr.bf16.mxu0 0
    %483 = vmatmul.mubr.bf16.gmra.mrb[0].mxu0 %v448
    %v484 = vpop.f32.mrb[0].mxu0
    %v485 = vadd.f32 %v99, %v484
    %v486 = vpop.f32.mrb[0].mxu0
    %v487 = vpop.f32.mrb[0].mxu0
    %v488 = vpop.f32.mrb[0].mxu0
    %489 = vdwg.mxu0
    %v490 = vtanh.pop %v485
    %v491 = vxor.u32 %v485, 2147483648
    %v492 = vmul.f32 %v491, 1.442695
    %v493 = vpow.pop %v492
    %v494 = vadd.f32 %v493, 1.0
    %v495 = vrcp.pop %v494
    %v496 = vmul.f32 1.0, %v495
    %v497 = vsel %vm61, %v490, %v496
    %v498 = vmul.f32 %v497, %v181
    %500 = vrot.lane.b32.xlu0 %v497, 64
    %v501 = vpop.permute.xlu0 %500
    %v503 = vmul.f32 %v497, %v501
    %505 = vrot.lane.b32.xlu0 %v503, 32
    %v506 = vpop.permute.xlu0 %505
    %v508 = vadd.f32 %v498, %v506
    %v509 = vtanh.pop %v508
    %511 = vrot.lane.b32.xlu0 %v509, 64
    %v512 = vpop.permute.xlu0 %511
    %v514 = vmul.f32 %v497, %v512
    %516 = vrot.lane.b32.xlu0 %v514, 32
    %v517 = vpop.permute.xlu0 %516
    %520 = vrot.lane.b32.xlu0 %v293, 64
    %v521 = vpop.permute.xlu0 %520
    %v523 = vsel %vm192, %v517, %v521
    %v524 = vpack.c.bf16 %v523, %v523
    %v526 = vsel %vm225, %v524, 0
    %528 = vmatprep.subr.bf16.mxu0 0
    %529 = vmatpush1.bf16.msra.mxu0 %v217
    %530 = vmatprep.subr.bf16.mxu0 0
    %531 = vmatpush1.bf16.msra.mxu0 %v218
    %532 = vmatprep.subr.bf16.mxu0 0
    %533 = vmatpush1.bf16.msra.mxu0 %v219
    %534 = vmatprep.subr.bf16.mxu0 0
    %535 = vmatpush1.bf16.msra.mxu0 %v220
    %536 = vmatprep.subr.bf16.mxu0 0
    %537 = vmatpush1.bf16.msra.mxu0 0
    %538 = vmatprep.subr.bf16.mxu0 0
    %539 = vmatpush1.bf16.msra.mxu0 0
    %540 = vmatprep.subr.bf16.mxu0 0
    %541 = vmatpush1.bf16.msra.mxu0 0
    %542 = vmatprep.subr.bf16.mxu0 0
    %543 = vmatpush1.bf16.msra.mxu0 0
    %544 = vmatprep.subr.bf16.mxu0 0
    %545 = vmatpush1.bf16.msra.mxu0 0
    %546 = vmatprep.subr.bf16.mxu0 0
    %547 = vmatpush1.bf16.msra.mxu0 0
    %548 = vmatprep.subr.bf16.mxu0 0
    %549 = vmatpush1.bf16.msra.mxu0 0
    %550 = vmatprep.subr.bf16.mxu0 0
    %551 = vmatpush1.bf16.msra.mxu0 0
    %552 = vmatprep.subr.bf16.mxu0 0
    %553 = vmatpush1.bf16.msra.mxu0 0
    %554 = vmatprep.subr.bf16.mxu0 0
    %555 = vmatpush1.bf16.msra.mxu0 0
    %556 = vmatprep.subr.bf16.mxu0 0
    %557 = vmatpush1.bf16.msra.mxu0 0
    %558 = vmatprep.subr.bf16.mxu0 0
    %559 = vmatpush1.bf16.msra.mxu0 0
    %560 = vmatprep.mubr.bf16.mxu0 0
    %561 = vmatmul.mubr.bf16.gmra.mrb[0].mxu0 %v526
    %v562 = vpop.f32.mrb[0].mxu0
    %v563 = vadd.f32 %v199, %v562
    %v564 = vpop.f32.mrb[0].mxu0
    %v565 = vpop.f32.mrb[0].mxu0
    %v566 = vpop.f32.mrb[0].mxu0
    %567 = vdwg.mxu0
    %v568 = vtanh.pop %v563
    %v569 = vxor.u32 %v563, 2147483648
    %v570 = vmul.f32 %v569, 1.442695
    %v571 = vpow.pop %v570
    %v572 = vadd.f32 %v571, 1.0
    %v573 = vrcp.pop %v572
    %v574 = vmul.f32 1.0, %v573
    %v575 = vsel %vm61, %v568, %v574
    %v576 = vmul.f32 %v575, %v287
    %578 = vrot.lane.b32.xlu0 %v575, 64
    %v579 = vpop.permute.xlu0 %578
    %v581 = vmul.f32 %v575, %v579
    %583 = vrot.lane.b32.xlu0 %v581, 32
    %v584 = vpop.permute.xlu0 %583
    %v586 = vadd.f32 %v576, %v584
    %v587 = vtanh.pop %v586
    %589 = vrot.lane.b32.xlu0 %v587, 64
    %v590 = vpop.permute.xlu0 %589
    %v592 = vmul.f32 %v575, %v590
    %v593 = vpack.c.bf16 %v592, %v592
    %595 = vrot.lane.b32.xlu0 %v593, 32
    %v596 = vpop.permute.xlu0 %595
    %v598 = vsel %vm192, %v596, 0
    %600 = vmatprep.subr.bf16.mxu0 0
    %601 = vmatpush1.bf16.msra.mxu0 %v312
    %602 = vmatprep.subr.bf16.mxu0 0
    %603 = vmatpush1.bf16.msra.mxu0 %v313
    %604 = vmatprep.subr.bf16.mxu0 0
    %605 = vmatpush1.bf16.msra.mxu0 0
    %606 = vmatprep.subr.bf16.mxu0 0
    %607 = vmatpush1.bf16.msra.mxu0 0
    %608 = vmatprep.subr.bf16.mxu0 0
    %609 = vmatpush1.bf16.msra.mxu0 0
    %610 = vmatprep.subr.bf16.mxu0 0
    %611 = vmatpush1.bf16.msra.mxu0 0
    %612 = vmatprep.subr.bf16.mxu0 0
    %613 = vmatpush1.bf16.msra.mxu0 0
    %614 = vmatprep.subr.bf16.mxu0 0
    %615 = vmatpush1.bf16.msra.mxu0 0
    %616 = vmatprep.subr.bf16.mxu0 0
    %617 = vmatpush1.bf16.msra.mxu0 0
    %618 = vmatprep.subr.bf16.mxu0 0
    %619 = vmatpush1.bf16.msra.mxu0 0
    %620 = vmatprep.subr.bf16.mxu0 0
    %621 = vmatpush1.bf16.msra.mxu0 0
    %622 = vmatprep.subr.bf16.mxu0 0
    %623 = vmatpush1.bf16.msra.mxu0 0
    %624 = vmatprep.subr.bf16.mxu0 0
    %625 = vmatpush1.bf16.msra.mxu0 0
    %626 = vmatprep.subr.bf16.mxu0 0
    %627 = vmatpush1.bf16.msra.mxu0 0
    %628 = vmatprep.subr.bf16.mxu0 0
    %629 = vmatpush1.bf16.msra.mxu0 0
    %630 = vmatprep.subr.bf16.mxu0 0
    %631 = vmatpush1.bf16.msra.mxu0 0
    %632 = vmatprep.mubr.bf16.mxu0 0
    %633 = vmatmul.mubr.bf16.gmra.mrb[0].mxu0 %v598
    %v634 = vpop.f32.mrb[0].mxu0
    %v635 = vadd.f32 %v299, %v634
    %v636 = vpop.f32.mrb[0].mxu0
    %v637 = vpop.f32.mrb[0].mxu0
    %v638 = vpop.f32.mrb[0].mxu0
    %639 = vdwg.mxu0
    %v641 = vcombine.high %v635, %v635
    %v643 = vunpack.c.l.s4 1966171168
    %v644 = vunpack.c.0.s8 %v643
    %v645 = vlaneseq
    %v646 = vshrl.u32 %v645, 7
    %v647 = vsub.s32 %v644, %v646
    %v648 = vrot.slane %v635, %v647
    %v650 = vunpack.c.l.s4 1966171168
    %v651 = vunpack.c.0.s8 %v650
    %v652 = vlaneseq
    %v653 = vshrl.u32 %v652, 7
    %v654 = vsub.s32 %v651, %v653
    %v655 = vrot.slane %v641, %v654
    %v656 = vcombine.high %v648, %v648
    %v657 = vcombine.high %v655, %v655
    %v659 = vunpack.c.l.s4 1966171168
    %v660 = vunpack.c.0.s8 %v659
    %v661 = vlaneseq
    %v662 = vshrl.u32 %v661, 7
    %v663 = vsub.s32 %v660, %v662
    %v664 = vrot.slane %v648, %v663
    %v666 = vunpack.c.l.s4 1966171168
    %v667 = vunpack.c.0.s8 %v666
    %v668 = vlaneseq
    %v669 = vshrl.u32 %v668, 7
    %v670 = vsub.s32 %v667, %v669
    %v671 = vrot.slane %v655, %v670
    %v673 = vunpack.c.l.s4 1966171168
    %v674 = vunpack.c.0.s8 %v673
    %v675 = vlaneseq
    %v676 = vshrl.u32 %v675, 7
    %v677 = vsub.s32 %v674, %v676
    %v678 = vrot.slane %v656, %v677
    %v680 = vunpack.c.l.s4 1966171168
    %v681 = vunpack.c.0.s8 %v680
    %v682 = vlaneseq
    %v683 = vshrl.u32 %v682, 7
    %v684 = vsub.s32 %v681, %v683
    %v685 = vrot.slane %v657, %v684
    %v686 = vcombine.high %v664, %v664
    %v687 = vcombine.high %v671, %v671
    %v688 = vcombine.high %v678, %v678
    %v689 = vcombine.high %v685, %v685
    %698 = vst [vmem:[#allocation2 + $0x1] sm:$0x1] %v664
    %699 = vst [vmem:[#allocation2 + $0x9] sm:$0x1] %v678
    %700 = vst [vmem:[#allocation2 + $0x11] sm:$0x1] %v686
    %701 = vst [vmem:[#allocation2 + $0x19] sm:$0x1] %v688
    %702 = vst [vmem:[#allocation2 + $0x21] sm:$0x1] %v671
    %703 = vst [vmem:[#allocation2 + $0x29] sm:$0x1] %v685
    %704 = vst [vmem:[#allocation2 + $0x31] sm:$0x1] %v687
    %705 = vst [vmem:[#allocation2 + $0x39] sm:$0x1] %v689
    %v706 = vsel %vm77, %v70, %v28
    %v707 = vsel %vm80, %v73, %v706
    %v708 = vsel %vm83, %v76, %v707
    %v709 = vsel %vm86, %v79, %v708
    %v710 = vsel %vm89, %v82, %v709
    %v711 = vsel %vm71, %v88, %v85
    %v714 = vrot.slane %v514, 6
    %715 = vrot.lane.b32.xlu0 %v714, 48
    %v716 = vpop.permute.xlu0 %715
    %v718 = vsel %vm92, %v710, %v716
    %v719 = vsel %vm92, %v711, %v716
    %v720 = vpack.c.bf16 %v719, %v718
    %v722 = vrot.slane %v720, 1
    %v724 = vsel %vm119, %v722, 0
    %726 = vmatprep.subr.bf16.mxu0 0
    %727 = vmatpush1.bf16.msra.mxu0 %v113
    %728 = vmatprep.subr.bf16.mxu0 0
    %729 = vmatpush1.bf16.msra.mxu0 %v114
    %730 = vmatprep.subr.bf16.mxu0 0
    %731 = vmatpush1.bf16.msra.mxu0 %v115
    %732 = vmatprep.subr.bf16.mxu0 0
    %733 = vmatpush1.bf16.msra.mxu0 0
    %734 = vmatprep.subr.bf16.mxu0 0
    %735 = vmatpush1.bf16.msra.mxu0 0
    %736 = vmatprep.subr.bf16.mxu0 0
    %737 = vmatpush1.bf16.msra.mxu0 0
    %738 = vmatprep.subr.bf16.mxu0 0
    %739 = vmatpush1.bf16.msra.mxu0 0
    %740 = vmatprep.subr.bf16.mxu0 0
    %741 = vmatpush1.bf16.msra.mxu0 0
    %742 = vmatprep.subr.bf16.mxu0 0
    %743 = vmatpush1.bf16.msra.mxu0 0
    %744 = vmatprep.subr.bf16.mxu0 0
    %745 = vmatpush1.bf16.msra.mxu0 0
    %746 = vmatprep.subr.bf16.mxu0 0
    %747 = vmatpush1.bf16.msra.mxu0 0
    %748 = vmatprep.subr.bf16.mxu0 0
    %749 = vmatpush1.bf16.msra.mxu0 0
    %750 = vmatprep.subr.bf16.mxu0 0
    %751 = vmatpush1.bf16.msra.mxu0 0
    %752 = vmatprep.subr.bf16.mxu0 0
    %753 = vmatpush1.bf16.msra.mxu0 0
    %754 = vmatprep.subr.bf16.mxu0 0
    %755 = vmatpush1.bf16.msra.mxu0 0
    %756 = vmatprep.subr.bf16.mxu0 0
    %757 = vmatpush1.bf16.msra.mxu0 0
    %758 = vmatprep.mubr.bf16.mxu0 0
    %759 = vmatmul.mubr.bf16.gmra.mrb[0].mxu0 %v724
    %v760 = vpop.f32.mrb[0].mxu0
    %v761 = vadd.f32 %v99, %v760
    %v762 = vpop.f32.mrb[0].mxu0
    %v763 = vpop.f32.mrb[0].mxu0
    %v764 = vpop.f32.mrb[0].mxu0
    %765 = vdwg.mxu0
    %v766 = vtanh.pop %v761
    %v767 = vxor.u32 %v761, 2147483648
    %v768 = vmul.f32 %v767, 1.442695
    %v769 = vpow.pop %v768
    %v770 = vadd.f32 %v769, 1.0
    %v771 = vrcp.pop %v770
    %v772 = vmul.f32 1.0, %v771
    %v773 = vsel %vm61, %v766, %v772
    %v774 = vmul.f32 %v773, %v508
    %776 = vrot.lane.b32.xlu0 %v773, 64
    %v777 = vpop.permute.xlu0 %776
    %v779 = vmul.f32 %v773, %v777
    %781 = vrot.lane.b32.xlu0 %v779, 32
    %v782 = vpop.permute.xlu0 %781
    %v784 = vadd.f32 %v774, %v782
    %v785 = vtanh.pop %v784
    %787 = vrot.lane.b32.xlu0 %v785, 64
    %v788 = vpop.permute.xlu0 %787
    %v790 = vmul.f32 %v773, %v788
    %792 = vrot.lane.b32.xlu0 %v790, 32
    %v793 = vpop.permute.xlu0 %792
    %796 = vrot.lane.b32.xlu0 %v592, 64
    %v797 = vpop.permute.xlu0 %796
    %v799 = vsel %vm192, %v793, %v797
    %v800 = vpack.c.bf16 %v799, %v799
    %v802 = vsel %vm225, %v800, 0
    %804 = vmatprep.subr.bf16.mxu0 0
    %805 = vmatpush1.bf16.msra.mxu0 %v217
    %806 = vmatprep.subr.bf16.mxu0 0
    %807 = vmatpush1.bf16.msra.mxu0 %v218
    %808 = vmatprep.subr.bf16.mxu0 0
    %809 = vmatpush1.bf16.msra.mxu0 %v219
    %810 = vmatprep.subr.bf16.mxu0 0
    %811 = vmatpush1.bf16.msra.mxu0 %v220
    %812 = vmatprep.subr.bf16.mxu0 0
    %813 = vmatpush1.bf16.msra.mxu0 0
    %814 = vmatprep.subr.bf16.mxu0 0
    %815 = vmatpush1.bf16.msra.mxu0 0
    %816 = vmatprep.subr.bf16.mxu0 0
    %817 = vmatpush1.bf16.msra.mxu0 0
    %818 = vmatprep.subr.bf16.mxu0 0
    %819 = vmatpush1.bf16.msra.mxu0 0
    %820 = vmatprep.subr.bf16.mxu0 0
    %821 = vmatpush1.bf16.msra.mxu0 0
    %822 = vmatprep.subr.bf16.mxu0 0
    %823 = vmatpush1.bf16.msra.mxu0 0
    %824 = vmatprep.subr.bf16.mxu0 0
    %825 = vmatpush1.bf16.msra.mxu0 0
    %826 = vmatprep.subr.bf16.mxu0 0
    %827 = vmatpush1.bf16.msra.mxu0 0
    %828 = vmatprep.subr.bf16.mxu0 0
    %829 = vmatpush1.bf16.msra.mxu0 0
    %830 = vmatprep.subr.bf16.mxu0 0
    %831 = vmatpush1.bf16.msra.mxu0 0
    %832 = vmatprep.subr.bf16.mxu0 0
    %833 = vmatpush1.bf16.msra.mxu0 0
    %834 = vmatprep.subr.bf16.mxu0 0
    %835 = vmatpush1.bf16.msra.mxu0 0
    %836 = vmatprep.mubr.bf16.mxu0 0
    %837 = vmatmul.mubr.bf16.gmra.mrb[0].mxu0 %v802
    %v838 = vpop.f32.mrb[0].mxu0
    %v839 = vadd.f32 %v199, %v838
    %v840 = vpop.f32.mrb[0].mxu0
    %v841 = vpop.f32.mrb[0].mxu0
    %v842 = vpop.f32.mrb[0].mxu0
    %843 = vdwg.mxu0
    %v844 = vtanh.pop %v839
    %v845 = vxor.u32 %v839, 2147483648
    %v846 = vmul.f32 %v845, 1.442695
    %v847 = vpow.pop %v846
    %v848 = vadd.f32 %v847, 1.0
    %v849 = vrcp.pop %v848
    %v850 = vmul.f32 1.0, %v849
    %v851 = vsel %vm61, %v844, %v850
    %v852 = vmul.f32 %v851, %v586
    %854 = vrot.lane.b32.xlu0 %v851, 64
    %v855 = vpop.permute.xlu0 %854
    %v857 = vmul.f32 %v851, %v855
    %859 = vrot.lane.b32.xlu0 %v857, 32
    %v860 = vpop.permute.xlu0 %859
    %v862 = vadd.f32 %v852, %v860
    %v863 = vtanh.pop %v862
    %865 = vrot.lane.b32.xlu0 %v863, 64
    %v866 = vpop.permute.xlu0 %865
    %v868 = vmul.f32 %v851, %v866
    %v869 = vpack.c.bf16 %v868, %v868
    %871 = vrot.lane.b32.xlu0 %v869, 32
    %v872 = vpop.permute.xlu0 %871
    %v874 = vsel %vm192, %v872, 0
    %876 = vmatprep.subr.bf16.mxu0 0
    %877 = vmatpush1.bf16.msra.mxu0 %v312
    %878 = vmatprep.subr.bf16.mxu0 0
    %879 = vmatpush1.bf16.msra.mxu0 %v313
    %880 = vmatprep.subr.bf16.mxu0 0
    %881 = vmatpush1.bf16.msra.mxu0 0
    %882 = vmatprep.subr.bf16.mxu0 0
    %883 = vmatpush1.bf16.msra.mxu0 0
    %884 = vmatprep.subr.bf16.mxu0 0
    %885 = vmatpush1.bf16.msra.mxu0 0
    %886 = vmatprep.subr.bf16.mxu0 0
    %887 = vmatpush1.bf16.msra.mxu0 0
    %888 = vmatprep.subr.bf16.mxu0 0
    %889 = vmatpush1.bf16.msra.mxu0 0
    %890 = vmatprep.subr.bf16.mxu0 0
    %891 = vmatpush1.bf16.msra.mxu0 0
    %892 = vmatprep.subr.bf16.mxu0 0
    %893 = vmatpush1.bf16.msra.mxu0 0
    %894 = vmatprep.subr.bf16.mxu0 0
    %895 = vmatpush1.bf16.msra.mxu0 0
    %896 = vmatprep.subr.bf16.mxu0 0
    %897 = vmatpush1.bf16.msra.mxu0 0
    %898 = vmatprep.subr.bf16.mxu0 0
    %899 = vmatpush1.bf16.msra.mxu0 0
    %900 = vmatprep.subr.bf16.mxu0 0
    %901 = vmatpush1.bf16.msra.mxu0 0
    %902 = vmatprep.subr.bf16.mxu0 0
    %903 = vmatpush1.bf16.msra.mxu0 0
    %904 = vmatprep.subr.bf16.mxu0 0
    %905 = vmatpush1.bf16.msra.mxu0 0
    %906 = vmatprep.subr.bf16.mxu0 0
    %907 = vmatpush1.bf16.msra.mxu0 0
    %908 = vmatprep.mubr.bf16.mxu0 0
    %909 = vmatmul.mubr.bf16.gmra.mrb[0].mxu0 %v874
    %v910 = vpop.f32.mrb[0].mxu0
    %v911 = vadd.f32 %v299, %v910
    %v912 = vpop.f32.mrb[0].mxu0
    %v913 = vpop.f32.mrb[0].mxu0
    %v914 = vpop.f32.mrb[0].mxu0
    %915 = vdwg.mxu0
    %v917 = vcombine.high %v911, %v911
    %v919 = vunpack.c.l.s4 1966171168
    %v920 = vunpack.c.0.s8 %v919
    %v921 = vlaneseq
    %v922 = vshrl.u32 %v921, 7
    %v923 = vsub.s32 %v920, %v922
    %v924 = vrot.slane %v911, %v923
    %v926 = vunpack.c.l.s4 1966171168
    %v927 = vunpack.c.0.s8 %v926
    %v928 = vlaneseq
    %v929 = vshrl.u32 %v928, 7
    %v930 = vsub.s32 %v927, %v929
    %v931 = vrot.slane %v917, %v930
    %v932 = vcombine.high %v924, %v924
    %v933 = vcombine.high %v931, %v931
    %v935 = vunpack.c.l.s4 1966171168
    %v936 = vunpack.c.0.s8 %v935
    %v937 = vlaneseq
    %v938 = vshrl.u32 %v937, 7
    %v939 = vsub.s32 %v936, %v938
    %v940 = vrot.slane %v924, %v939
    %v942 = vunpack.c.l.s4 1966171168
    %v943 = vunpack.c.0.s8 %v942
    %v944 = vlaneseq
    %v945 = vshrl.u32 %v944, 7
    %v946 = vsub.s32 %v943, %v945
    %v947 = vrot.slane %v931, %v946
    %v949 = vunpack.c.l.s4 1966171168
    %v950 = vunpack.c.0.s8 %v949
    %v951 = vlaneseq
    %v952 = vshrl.u32 %v951, 7
    %v953 = vsub.s32 %v950, %v952
    %v954 = vrot.slane %v932, %v953
    %v956 = vunpack.c.l.s4 1966171168
    %v957 = vunpack.c.0.s8 %v956
    %v958 = vlaneseq
    %v959 = vshrl.u32 %v958, 7
    %v960 = vsub.s32 %v957, %v959
    %v961 = vrot.slane %v933, %v960
    %v962 = vcombine.high %v940, %v940
    %v963 = vcombine.high %v947, %v947
    %v964 = vcombine.high %v954, %v954
    %v965 = vcombine.high %v961, %v961
    %974 = vst [vmem:[#allocation2 + $0x2] sm:$0x1] %v940
    %975 = vst [vmem:[#allocation2 + $0xa] sm:$0x1] %v954
    %976 = vst [vmem:[#allocation2 + $0x12] sm:$0x1] %v962
    %977 = vst [vmem:[#allocation2 + $0x1a] sm:$0x1] %v964
    %978 = vst [vmem:[#allocation2 + $0x22] sm:$0x1] %v947
    %979 = vst [vmem:[#allocation2 + $0x2a] sm:$0x1] %v961
    %980 = vst [vmem:[#allocation2 + $0x32] sm:$0x1] %v963
    %981 = vst [vmem:[#allocation2 + $0x3a] sm:$0x1] %v965
    %v982 = vsel %vm80, %v70, %v28
    %v983 = vsel %vm83, %v73, %v982
    %v984 = vsel %vm86, %v76, %v983
    %v985 = vsel %vm89, %v79, %v984
    %v986 = vsel %vm71, %v85, %v82
    %v987 = vsel %vm74, %v88, %v986
    %v990 = vrot.slane %v790, 5
    %991 = vrot.lane.b32.xlu0 %v990, 48
    %v992 = vpop.permute.xlu0 %991
    %v994 = vsel %vm92, %v985, %v992
    %v995 = vsel %vm92, %v987, %v992
    %v996 = vpack.c.bf16 %v995, %v994
    %v998 = vshrl.u32 %v996, 16
    %v1000 = vrot.slane %v998, 1
    %v1001 = vshll.u32 %v996, 16
    %v1003 = vrot.slane %v1001, 2
    %v1004 = vor.u32 %v1000, %v1003
    %v1006 = vsel %vm119, %v1004, 0
    %1008 = vmatprep.subr.bf16.mxu0 0
    %1009 = vmatpush1.bf16.msra.mxu0 %v113
    %1010 = vmatprep.subr.bf16.mxu0 0
    %1011 = vmatpush1.bf16.msra.mxu0 %v114
    %1012 = vmatprep.subr.bf16.mxu0 0
    %1013 = vmatpush1.bf16.msra.mxu0 %v115
    %1014 = vmatprep.subr.bf16.mxu0 0
    %1015 = vmatpush1.bf16.msra.mxu0 0
    %1016 = vmatprep.subr.bf16.mxu0 0
    %1017 = vmatpush1.bf16.msra.mxu0 0
    %1018 = vmatprep.subr.bf16.mxu0 0
    %1019 = vmatpush1.bf16.msra.mxu0 0
    %1020 = vmatprep.subr.bf16.mxu0 0
    %1021 = vmatpush1.bf16.msra.mxu0 0
    %1022 = vmatprep.subr.bf16.mxu0 0
    %1023 = vmatpush1.bf16.msra.mxu0 0
    %1024 = vmatprep.subr.bf16.mxu0 0
    %1025 = vmatpush1.bf16.msra.mxu0 0
    %1026 = vmatprep.subr.bf16.mxu0 0
    %1027 = vmatpush1.bf16.msra.mxu0 0
    %1028 = vmatprep.subr.bf16.mxu0 0
    %1029 = vmatpush1.bf16.msra.mxu0 0
    %1030 = vmatprep.subr.bf16.mxu0 0
    %1031 = vmatpush1.bf16.msra.mxu0 0
    %1032 = vmatprep.subr.bf16.mxu0 0
    %1033 = vmatpush1.bf16.msra.mxu0 0
    %1034 = vmatprep.subr.bf16.mxu0 0
    %1035 = vmatpush1.bf16.msra.mxu0 0
    %1036 = vmatprep.subr.bf16.mxu0 0
    %1037 = vmatpush1.bf16.msra.mxu0 0
    %1038 = vmatprep.subr.bf16.mxu0 0
    %1039 = vmatpush1.bf16.msra.mxu0 0
    %1040 = vmatprep.mubr.bf16.mxu0 0
    %1041 = vmatmul.mubr.bf16.gmra.mrb[0].mxu0 %v1006
    %v1042 = vpop.f32.mrb[0].mxu0
    %v1043 = vadd.f32 %v99, %v1042
    %v1044 = vpop.f32.mrb[0].mxu0
    %v1045 = vpop.f32.mrb[0].mxu0
    %v1046 = vpop.f32.mrb[0].mxu0
    %1047 = vdwg.mxu0
    %v1048 = vtanh.pop %v1043
    %v1049 = vxor.u32 %v1043, 2147483648
    %v1050 = vmul.f32 %v1049, 1.442695
    %v1051 = vpow.pop %v1050
    %v1052 = vadd.f32 %v1051, 1.0
    %v1053 = vrcp.pop %v1052
    %v1054 = vmul.f32 1.0, %v1053
    %v1055 = vsel %vm61, %v1048, %v1054
    %v1056 = vmul.f32 %v1055, %v784
    %1058 = vrot.lane.b32.xlu0 %v1055, 64
    %v1059 = vpop.permute.xlu0 %1058
    %v1061 = vmul.f32 %v1055, %v1059
    %1063 = vrot.lane.b32.xlu0 %v1061, 32
    %v1064 = vpop.permute.xlu0 %1063
    %v1066 = vadd.f32 %v1056, %v1064
    %v1067 = vtanh.pop %v1066
    %1069 = vrot.lane.b32.xlu0 %v1067, 64
    %v1070 = vpop.permute.xlu0 %1069
    %v1072 = vmul.f32 %v1055, %v1070
    %1074 = vrot.lane.b32.xlu0 %v1072, 32
    %v1075 = vpop.permute.xlu0 %1074
    %1078 = vrot.lane.b32.xlu0 %v868, 64
    %v1079 = vpop.permute.xlu0 %1078
    %v1081 = vsel %vm192, %v1075, %v1079
    %v1082 = vpack.c.bf16 %v1081, %v1081
    %v1084 = vsel %vm225, %v1082, 0
    %1086 = vmatprep.subr.bf16.mxu0 0
    %1087 = vmatpush1.bf16.msra.mxu0 %v217
    %1088 = vmatprep.subr.bf16.mxu0 0
    %1089 = vmatpush1.bf16.msra.mxu0 %v218
    %1090 = vmatprep.subr.bf16.mxu0 0
    %1091 = vmatpush1.bf16.msra.mxu0 %v219
    %1092 = vmatprep.subr.bf16.mxu0 0
    %1093 = vmatpush1.bf16.msra.mxu0 %v220
    %1094 = vmatprep.subr.bf16.mxu0 0
    %1095 = vmatpush1.bf16.msra.mxu0 0
    %1096 = vmatprep.subr.bf16.mxu0 0
    %1097 = vmatpush1.bf16.msra.mxu0 0
    %1098 = vmatprep.subr.bf16.mxu0 0
    %1099 = vmatpush1.bf16.msra.mxu0 0
    %1100 = vmatprep.subr.bf16.mxu0 0
    %1101 = vmatpush1.bf16.msra.mxu0 0
    %1102 = vmatprep.subr.bf16.mxu0 0
    %1103 = vmatpush1.bf16.msra.mxu0 0
    %1104 = vmatprep.subr.bf16.mxu0 0
    %1105 = vmatpush1.bf16.msra.mxu0 0
    %1106 = vmatprep.subr.bf16.mxu0 0
    %1107 = vmatpush1.bf16.msra.mxu0 0
    %1108 = vmatprep.subr.bf16.mxu0 0
    %1109 = vmatpush1.bf16.msra.mxu0 0
    %1110 = vmatprep.subr.bf16.mxu0 0
    %1111 = vmatpush1.bf16.msra.mxu0 0
    %1112 = vmatprep.subr.bf16.mxu0 0
    %1113 = vmatpush1.bf16.msra.mxu0 0
    %1114 = vmatprep.subr.bf16.mxu0 0
    %1115 = vmatpush1.bf16.msra.mxu0 0
    %1116 = vmatprep.subr.bf16.mxu0 0
    %1117 = vmatpush1.bf16.msra.mxu0 0
    %1118 = vmatprep.mubr.bf16.mxu0 0
    %1119 = vmatmul.mubr.bf16.gmra.mrb[0].mxu0 %v1084
    %v1120 = vpop.f32.mrb[0].mxu0
    %v1121 = vadd.f32 %v199, %v1120
    %v1122 = vpop.f32.mrb[0].mxu0
    %v1123 = vpop.f32.mrb[0].mxu0
    %v1124 = vpop.f32.mrb[0].mxu0
    %1125 = vdwg.mxu0
    %v1126 = vtanh.pop %v1121
    %v1127 = vxor.u32 %v1121, 2147483648
    %v1128 = vmul.f32 %v1127, 1.442695
    %v1129 = vpow.pop %v1128
    %v1130 = vadd.f32 %v1129, 1.0
    %v1131 = vrcp.pop %v1130
    %v1132 = vmul.f32 1.0, %v1131
    %v1133 = vsel %vm61, %v1126, %v1132
    %v1134 = vmul.f32 %v1133, %v862
    %1136 = vrot.lane.b32.xlu0 %v1133, 64
    %v1137 = vpop.permute.xlu0 %1136
    %v1139 = vmul.f32 %v1133, %v1137
    %1141 = vrot.lane.b32.xlu0 %v1139, 32
    %v1142 = vpop.permute.xlu0 %1141
    %v1144 = vadd.f32 %v1134, %v1142
    %v1145 = vtanh.pop %v1144
    %1147 = vrot.lane.b32.xlu0 %v1145, 64
    %v1148 = vpop.permute.xlu0 %1147
    %v1150 = vmul.f32 %v1133, %v1148
    %v1151 = vpack.c.bf16 %v1150, %v1150
    %1153 = vrot.lane.b32.xlu0 %v1151, 32
    %v1154 = vpop.permute.xlu0 %1153
    %v1156 = vsel %vm192, %v1154, 0
    %1158 = vmatprep.subr.bf16.mxu0 0
    %1159 = vmatpush1.bf16.msra.mxu0 %v312
    %1160 = vmatprep.subr.bf16.mxu0 0
    %1161 = vmatpush1.bf16.msra.mxu0 %v313
    %1162 = vmatprep.subr.bf16.mxu0 0
    %1163 = vmatpush1.bf16.msra.mxu0 0
    %1164 = vmatprep.subr.bf16.mxu0 0
    %1165 = vmatpush1.bf16.msra.mxu0 0
    %1166 = vmatprep.subr.bf16.mxu0 0
    %1167 = vmatpush1.bf16.msra.mxu0 0
    %1168 = vmatprep.subr.bf16.mxu0 0
    %1169 = vmatpush1.bf16.msra.mxu0 0
    %1170 = vmatprep.subr.bf16.mxu0 0
    %1171 = vmatpush1.bf16.msra.mxu0 0
    %1172 = vmatprep.subr.bf16.mxu0 0
    %1173 = vmatpush1.bf16.msra.mxu0 0
    %1174 = vmatprep.subr.bf16.mxu0 0
    %1175 = vmatpush1.bf16.msra.mxu0 0
    %1176 = vmatprep.subr.bf16.mxu0 0
    %1177 = vmatpush1.bf16.msra.mxu0 0
    %1178 = vmatprep.subr.bf16.mxu0 0
    %1179 = vmatpush1.bf16.msra.mxu0 0
    %1180 = vmatprep.subr.bf16.mxu0 0
    %1181 = vmatpush1.bf16.msra.mxu0 0
    %1182 = vmatprep.subr.bf16.mxu0 0
    %1183 = vmatpush1.bf16.msra.mxu0 0
    %1184 = vmatprep.subr.bf16.mxu0 0
    %1185 = vmatpush1.bf16.msra.mxu0 0
    %1186 = vmatprep.subr.bf16.mxu0 0
    %1187 = vmatpush1.bf16.msra.mxu0 0
    %1188 = vmatprep.subr.bf16.mxu0 0
    %1189 = vmatpush1.bf16.msra.mxu0 0
    %1190 = vmatprep.mubr.bf16.mxu0 0
    %1191 = vmatmul.mubr.bf16.gmra.mrb[0].mxu0 %v1156
    %v1192 = vpop.f32.mrb[0].mxu0
    %v1193 = vadd.f32 %v299, %v1192
    %v1194 = vpop.f32.mrb[0].mxu0
    %v1195 = vpop.f32.mrb[0].mxu0
    %v1196 = vpop.f32.mrb[0].mxu0
    %1197 = vdwg.mxu0
    %v1199 = vcombine.high %v1193, %v1193
    %v1201 = vunpack.c.l.s4 1966171168
    %v1202 = vunpack.c.0.s8 %v1201
    %v1203 = vlaneseq
    %v1204 = vshrl.u32 %v1203, 7
    %v1205 = vsub.s32 %v1202, %v1204
    %v1206 = vrot.slane %v1193, %v1205
    %v1208 = vunpack.c.l.s4 1966171168
    %v1209 = vunpack.c.0.s8 %v1208
    %v1210 = vlaneseq
    %v1211 = vshrl.u32 %v1210, 7
    %v1212 = vsub.s32 %v1209, %v1211
    %v1213 = vrot.slane %v1199, %v1212
    %v1214 = vcombine.high %v1206, %v1206
    %v1215 = vcombine.high %v1213, %v1213
    %v1217 = vunpack.c.l.s4 1966171168
    %v1218 = vunpack.c.0.s8 %v1217
    %v1219 = vlaneseq
    %v1220 = vshrl.u32 %v1219, 7
    %v1221 = vsub.s32 %v1218, %v1220
    %v1222 = vrot.slane %v1206, %v1221
    %v1224 = vunpack.c.l.s4 1966171168
    %v1225 = vunpack.c.0.s8 %v1224
    %v1226 = vlaneseq
    %v1227 = vshrl.u32 %v1226, 7
    %v1228 = vsub.s32 %v1225, %v1227
    %v1229 = vrot.slane %v1213, %v1228
    %v1231 = vunpack.c.l.s4 1966171168
    %v1232 = vunpack.c.0.s8 %v1231
    %v1233 = vlaneseq
    %v1234 = vshrl.u32 %v1233, 7
    %v1235 = vsub.s32 %v1232, %v1234
    %v1236 = vrot.slane %v1214, %v1235
    %v1238 = vunpack.c.l.s4 1966171168
    %v1239 = vunpack.c.0.s8 %v1238
    %v1240 = vlaneseq
    %v1241 = vshrl.u32 %v1240, 7
    %v1242 = vsub.s32 %v1239, %v1241
    %v1243 = vrot.slane %v1215, %v1242
    %v1244 = vcombine.high %v1222, %v1222
    %v1245 = vcombine.high %v1229, %v1229
    %v1246 = vcombine.high %v1236, %v1236
    %v1247 = vcombine.high %v1243, %v1243
    %1256 = vst [vmem:[#allocation2 + $0x3] sm:$0x1] %v1222
    %1257 = vst [vmem:[#allocation2 + $0xb] sm:$0x1] %v1236
    %1258 = vst [vmem:[#allocation2 + $0x13] sm:$0x1] %v1244
    %1259 = vst [vmem:[#allocation2 + $0x1b] sm:$0x1] %v1246
    %1260 = vst [vmem:[#allocation2 + $0x23] sm:$0x1] %v1229
    %1261 = vst [vmem:[#allocation2 + $0x2b] sm:$0x1] %v1243
    %1262 = vst [vmem:[#allocation2 + $0x33] sm:$0x1] %v1245
    %1263 = vst [vmem:[#allocation2 + $0x3b] sm:$0x1] %v1247
    %v1264 = vsel %vm83, %v70, %v28
    %v1265 = vsel %vm86, %v73, %v1264
    %v1266 = vsel %vm89, %v76, %v1265
    %v1267 = vsel %vm71, %v82, %v79
    %v1268 = vsel %vm74, %v85, %v1267
    %v1269 = vsel %vm77, %v88, %v1268
    %v1272 = vrot.slane %v1072, 4
    %1273 = vrot.lane.b32.xlu0 %v1272, 48
    %v1274 = vpop.permute.xlu0 %1273
    %v1276 = vsel %vm92, %v1266, %v1274
    %v1277 = vsel %vm92, %v1269, %v1274
    %v1278 = vpack.c.bf16 %v1277, %v1276
    %v1280 = vrot.slane %v1278, 2
    %v1282 = vsel %vm119, %v1280, 0
    %1284 = vmatprep.subr.bf16.mxu0 0
    %1285 = vmatpush1.bf16.msra.mxu0 %v113
    %1286 = vmatprep.subr.bf16.mxu0 0
    %1287 = vmatpush1.bf16.msra.mxu0 %v114
    %1288 = vmatprep.subr.bf16.mxu0 0
    %1289 = vmatpush1.bf16.msra.mxu0 %v115
    %1290 = vmatprep.subr.bf16.mxu0 0
    %1291 = vmatpush1.bf16.msra.mxu0 0
    %1292 = vmatprep.subr.bf16.mxu0 0
    %1293 = vmatpush1.bf16.msra.mxu0 0
    %1294 = vmatprep.subr.bf16.mxu0 0
    %1295 = vmatpush1.bf16.msra.mxu0 0
    %1296 = vmatprep.subr.bf16.mxu0 0
    %1297 = vmatpush1.bf16.msra.mxu0 0
    %1298 = vmatprep.subr.bf16.mxu0 0
    %1299 = vmatpush1.bf16.msra.mxu0 0
    %1300 = vmatprep.subr.bf16.mxu0 0
    %1301 = vmatpush1.bf16.msra.mxu0 0
    %1302 = vmatprep.subr.bf16.mxu0 0
    %1303 = vmatpush1.bf16.msra.mxu0 0
    %1304 = vmatprep.subr.bf16.mxu0 0
    %1305 = vmatpush1.bf16.msra.mxu0 0
    %1306 = vmatprep.subr.bf16.mxu0 0
    %1307 = vmatpush1.bf16.msra.mxu0 0
    %1308 = vmatprep.subr.bf16.mxu0 0
    %1309 = vmatpush1.bf16.msra.mxu0 0
    %1310 = vmatprep.subr.bf16.mxu0 0
    %1311 = vmatpush1.bf16.msra.mxu0 0
    %1312 = vmatprep.subr.bf16.mxu0 0
    %1313 = vmatpush1.bf16.msra.mxu0 0
    %1314 = vmatprep.subr.bf16.mxu0 0
    %1315 = vmatpush1.bf16.msra.mxu0 0
    %1316 = vmatprep.mubr.bf16.mxu0 0
    %1317 = vmatmul.mubr.bf16.gmra.mrb[0].mxu0 %v1282
    %v1318 = vpop.f32.mrb[0].mxu0
    %v1319 = vadd.f32 %v99, %v1318
    %v1320 = vpop.f32.mrb[0].mxu0
    %v1321 = vpop.f32.mrb[0].mxu0
    %v1322 = vpop.f32.mrb[0].mxu0
    %1323 = vdwg.mxu0
    %v1324 = vtanh.pop %v1319
    %v1325 = vxor.u32 %v1319, 2147483648
    %v1326 = vmul.f32 %v1325, 1.442695
    %v1327 = vpow.pop %v1326
    %v1328 = vadd.f32 %v1327, 1.0
    %v1329 = vrcp.pop %v1328
    %v1330 = vmul.f32 1.0, %v1329
    %v1331 = vsel %vm61, %v1324, %v1330
    %v1332 = vmul.f32 %v1331, %v1066
    %1334 = vrot.lane.b32.xlu0 %v1331, 64
    %v1335 = vpop.permute.xlu0 %1334
    %v1337 = vmul.f32 %v1331, %v1335
    %1339 = vrot.lane.b32.xlu0 %v1337, 32
    %v1340 = vpop.permute.xlu0 %1339
    %v1342 = vadd.f32 %v1332, %v1340
    %v1343 = vtanh.pop %v1342
    %1345 = vrot.lane.b32.xlu0 %v1343, 64
    %v1346 = vpop.permute.xlu0 %1345
    %v1348 = vmul.f32 %v1331, %v1346
    %1350 = vrot.lane.b32.xlu0 %v1348, 32
    %v1351 = vpop.permute.xlu0 %1350
    %1354 = vrot.lane.b32.xlu0 %v1150, 64
    %v1355 = vpop.permute.xlu0 %1354
    %v1357 = vsel %vm192, %v1351, %v1355
    %v1358 = vpack.c.bf16 %v1357, %v1357
    %v1360 = vsel %vm225, %v1358, 0
    %1362 = vmatprep.subr.bf16.mxu0 0
    %1363 = vmatpush1.bf16.msra.mxu0 %v217
    %1364 = vmatprep.subr.bf16.mxu0 0
    %1365 = vmatpush1.bf16.msra.mxu0 %v218
    %1366 = vmatprep.subr.bf16.mxu0 0
    %1367 = vmatpush1.bf16.msra.mxu0 %v219
    %1368 = vmatprep.subr.bf16.mxu0 0
    %1369 = vmatpush1.bf16.msra.mxu0 %v220
    %1370 = vmatprep.subr.bf16.mxu0 0
    %1371 = vmatpush1.bf16.msra.mxu0 0
    %1372 = vmatprep.subr.bf16.mxu0 0
    %1373 = vmatpush1.bf16.msra.mxu0 0
    %1374 = vmatprep.subr.bf16.mxu0 0
    %1375 = vmatpush1.bf16.msra.mxu0 0
    %1376 = vmatprep.subr.bf16.mxu0 0
    %1377 = vmatpush1.bf16.msra.mxu0 0
    %1378 = vmatprep.subr.bf16.mxu0 0
    %1379 = vmatpush1.bf16.msra.mxu0 0
    %1380 = vmatprep.subr.bf16.mxu0 0
    %1381 = vmatpush1.bf16.msra.mxu0 0
    %1382 = vmatprep.subr.bf16.mxu0 0
    %1383 = vmatpush1.bf16.msra.mxu0 0
    %1384 = vmatprep.subr.bf16.mxu0 0
    %1385 = vmatpush1.bf16.msra.mxu0 0
    %1386 = vmatprep.subr.bf16.mxu0 0
    %1387 = vmatpush1.bf16.msra.mxu0 0
    %1388 = vmatprep.subr.bf16.mxu0 0
    %1389 = vmatpush1.bf16.msra.mxu0 0
    %1390 = vmatprep.subr.bf16.mxu0 0
    %1391 = vmatpush1.bf16.msra.mxu0 0
    %1392 = vmatprep.subr.bf16.mxu0 0
    %1393 = vmatpush1.bf16.msra.mxu0 0
    %1394 = vmatprep.mubr.bf16.mxu0 0
    %1395 = vmatmul.mubr.bf16.gmra.mrb[0].mxu0 %v1360
    %v1396 = vpop.f32.mrb[0].mxu0
    %v1397 = vadd.f32 %v199, %v1396
    %v1398 = vpop.f32.mrb[0].mxu0
    %v1399 = vpop.f32.mrb[0].mxu0
    %v1400 = vpop.f32.mrb[0].mxu0
    %1401 = vdwg.mxu0
    %v1402 = vtanh.pop %v1397
    %v1403 = vxor.u32 %v1397, 2147483648
    %v1404 = vmul.f32 %v1403, 1.442695
    %v1405 = vpow.pop %v1404
    %v1406 = vadd.f32 %v1405, 1.0
    %v1407 = vrcp.pop %v1406
    %v1408 = vmul.f32 1.0, %v1407
    %v1409 = vsel %vm61, %v1402, %v1408
    %v1410 = vmul.f32 %v1409, %v1144
    %1412 = vrot.lane.b32.xlu0 %v1409, 64
    %v1413 = vpop.permute.xlu0 %1412
    %v1415 = vmul.f32 %v1409, %v1413
    %1417 = vrot.lane.b32.xlu0 %v1415, 32
    %v1418 = vpop.permute.xlu0 %1417
    %v1420 = vadd.f32 %v1410, %v1418
    %v1421 = vtanh.pop %v1420
    %1423 = vrot.lane.b32.xlu0 %v1421, 64
    %v1424 = vpop.permute.xlu0 %1423
    %v1426 = vmul.f32 %v1409, %v1424
    %v1427 = vpack.c.bf16 %v1426, %v1426
    %1429 = vrot.lane.b32.xlu0 %v1427, 32
    %v1430 = vpop.permute.xlu0 %1429
    %v1432 = vsel %vm192, %v1430, 0
    %1434 = vmatprep.subr.bf16.mxu0 0
    %1435 = vmatpush1.bf16.msra.mxu0 %v312
    %1436 = vmatprep.subr.bf16.mxu0 0
    %1437 = vmatpush1.bf16.msra.mxu0 %v313
    %1438 = vmatprep.subr.bf16.mxu0 0
    %1439 = vmatpush1.bf16.msra.mxu0 0
    %1440 = vmatprep.subr.bf16.mxu0 0
    %1441 = vmatpush1.bf16.msra.mxu0 0
    %1442 = vmatprep.subr.bf16.mxu0 0
    %1443 = vmatpush1.bf16.msra.mxu0 0
    %1444 = vmatprep.subr.bf16.mxu0 0
    %1445 = vmatpush1.bf16.msra.mxu0 0
    %1446 = vmatprep.subr.bf16.mxu0 0
    %1447 = vmatpush1.bf16.msra.mxu0 0
    %1448 = vmatprep.subr.bf16.mxu0 0
    %1449 = vmatpush1.bf16.msra.mxu0 0
    %1450 = vmatprep.subr.bf16.mxu0 0
    %1451 = vmatpush1.bf16.msra.mxu0 0
    %1452 = vmatprep.subr.bf16.mxu0 0
    %1453 = vmatpush1.bf16.msra.mxu0 0
    %1454 = vmatprep.subr.bf16.mxu0 0
    %1455 = vmatpush1.bf16.msra.mxu0 0
    %1456 = vmatprep.subr.bf16.mxu0 0
    %1457 = vmatpush1.bf16.msra.mxu0 0
    %1458 = vmatprep.subr.bf16.mxu0 0
    %1459 = vmatpush1.bf16.msra.mxu0 0
    %1460 = vmatprep.subr.bf16.mxu0 0
    %1461 = vmatpush1.bf16.msra.mxu0 0
    %1462 = vmatprep.subr.bf16.mxu0 0
    %1463 = vmatpush1.bf16.msra.mxu0 0
    %1464 = vmatprep.subr.bf16.mxu0 0
    %1465 = vmatpush1.bf16.msra.mxu0 0
    %1466 = vmatprep.mubr.bf16.mxu0 0
    %1467 = vmatmul.mubr.bf16.gmra.mrb[0].mxu0 %v1432
    %v1468 = vpop.f32.mrb[0].mxu0
    %v1469 = vadd.f32 %v299, %v1468
    %v1470 = vpop.f32.mrb[0].mxu0
    %v1471 = vpop.f32.mrb[0].mxu0
    %v1472 = vpop.f32.mrb[0].mxu0
    %1473 = vdwg.mxu0
    %v1475 = vcombine.high %v1469, %v1469
    %v1477 = vunpack.c.l.s4 1966171168
    %v1478 = vunpack.c.0.s8 %v1477
    %v1479 = vlaneseq
    %v1480 = vshrl.u32 %v1479, 7
    %v1481 = vsub.s32 %v1478, %v1480
    %v1482 = vrot.slane %v1469, %v1481
    %v1484 = vunpack.c.l.s4 1966171168
    %v1485 = vunpack.c.0.s8 %v1484
    %v1486 = vlaneseq
    %v1487 = vshrl.u32 %v1486, 7
    %v1488 = vsub.s32 %v1485, %v1487
    %v1489 = vrot.slane %v1475, %v1488
    %v1490 = vcombine.high %v1482, %v1482
    %v1491 = vcombine.high %v1489, %v1489
    %v1493 = vunpack.c.l.s4 1966171168
    %v1494 = vunpack.c.0.s8 %v1493
    %v1495 = vlaneseq
    %v1496 = vshrl.u32 %v1495, 7
    %v1497 = vsub.s32 %v1494, %v1496
    %v1498 = vrot.slane %v1482, %v1497
    %v1500 = vunpack.c.l.s4 1966171168
    %v1501 = vunpack.c.0.s8 %v1500
    %v1502 = vlaneseq
    %v1503 = vshrl.u32 %v1502, 7
    %v1504 = vsub.s32 %v1501, %v1503
    %v1505 = vrot.slane %v1489, %v1504
    %v1507 = vunpack.c.l.s4 1966171168
    %v1508 = vunpack.c.0.s8 %v1507
    %v1509 = vlaneseq
    %v1510 = vshrl.u32 %v1509, 7
    %v1511 = vsub.s32 %v1508, %v1510
    %v1512 = vrot.slane %v1490, %v1511
    %v1514 = vunpack.c.l.s4 1966171168
    %v1515 = vunpack.c.0.s8 %v1514
    %v1516 = vlaneseq
    %v1517 = vshrl.u32 %v1516, 7
    %v1518 = vsub.s32 %v1515, %v1517
    %v1519 = vrot.slane %v1491, %v1518
    %v1520 = vcombine.high %v1498, %v1498
    %v1521 = vcombine.high %v1505, %v1505
    %v1522 = vcombine.high %v1512, %v1512
    %v1523 = vcombine.high %v1519, %v1519
    %1532 = vst [vmem:[#allocation2 + $0x4] sm:$0x1] %v1498
    %1533 = vst [vmem:[#allocation2 + $0xc] sm:$0x1] %v1512
    %1534 = vst [vmem:[#allocation2 + $0x14] sm:$0x1] %v1520
    %1535 = vst [vmem:[#allocation2 + $0x1c] sm:$0x1] %v1522
    %1536 = vst [vmem:[#allocation2 + $0x24] sm:$0x1] %v1505
    %1537 = vst [vmem:[#allocation2 + $0x2c] sm:$0x1] %v1519
    %1538 = vst [vmem:[#allocation2 + $0x34] sm:$0x1] %v1521
    %1539 = vst [vmem:[#allocation2 + $0x3c] sm:$0x1] %v1523
    %v1540 = vsel %vm86, %v70, %v28
    %v1541 = vsel %vm89, %v73, %v1540
    %v1542 = vsel %vm71, %v79, %v76
    %v1543 = vsel %vm74, %v82, %v1542
    %v1544 = vsel %vm77, %v85, %v1543
    %v1545 = vsel %vm80, %v88, %v1544
    %v1548 = vrot.slane %v1348, 3
    %1549 = vrot.lane.b32.xlu0 %v1548, 48
    %v1550 = vpop.permute.xlu0 %1549
    %v1552 = vsel %vm92, %v1541, %v1550
    %v1553 = vsel %vm92, %v1545, %v1550
    %v1554 = vpack.c.bf16 %v1553, %v1552
    %v1556 = vshrl.u32 %v1554, 16
    %v1558 = vrot.slane %v1556, 2
    %v1559 = vshll.u32 %v1554, 16
    %v1561 = vrot.slane %v1559, 3
    %v1562 = vor.u32 %v1558, %v1561
    %v1564 = vsel %vm119, %v1562, 0
    %1566 = vmatprep.subr.bf16.mxu0 0
    %1567 = vmatpush1.bf16.msra.mxu0 %v113
    %1568 = vmatprep.subr.bf16.mxu0 0
    %1569 = vmatpush1.bf16.msra.mxu0 %v114
    %1570 = vmatprep.subr.bf16.mxu0 0
    %1571 = vmatpush1.bf16.msra.mxu0 %v115
    %1572 = vmatprep.subr.bf16.mxu0 0
    %1573 = vmatpush1.bf16.msra.mxu0 0
    %1574 = vmatprep.subr.bf16.mxu0 0
    %1575 = vmatpush1.bf16.msra.mxu0 0
    %1576 = vmatprep.subr.bf16.mxu0 0
    %1577 = vmatpush1.bf16.msra.mxu0 0
    %1578 = vmatprep.subr.bf16.mxu0 0
    %1579 = vmatpush1.bf16.msra.mxu0 0
    %1580 = vmatprep.subr.bf16.mxu0 0
    %1581 = vmatpush1.bf16.msra.mxu0 0
    %1582 = vmatprep.subr.bf16.mxu0 0
    %1583 = vmatpush1.bf16.msra.mxu0 0
    %1584 = vmatprep.subr.bf16.mxu0 0
    %1585 = vmatpush1.bf16.msra.mxu0 0
    %1586 = vmatprep.subr.bf16.mxu0 0
    %1587 = vmatpush1.bf16.msra.mxu0 0
    %1588 = vmatprep.subr.bf16.mxu0 0
    %1589 = vmatpush1.bf16.msra.mxu0 0
    %1590 = vmatprep.subr.bf16.mxu0 0
    %1591 = vmatpush1.bf16.msra.mxu0 0
    %1592 = vmatprep.subr.bf16.mxu0 0
    %1593 = vmatpush1.bf16.msra.mxu0 0
    %1594 = vmatprep.subr.bf16.mxu0 0
    %1595 = vmatpush1.bf16.msra.mxu0 0
    %1596 = vmatprep.subr.bf16.mxu0 0
    %1597 = vmatpush1.bf16.msra.mxu0 0
    %1598 = vmatprep.mubr.bf16.mxu0 0
    %1599 = vmatmul.mubr.bf16.gmra.mrb[0].mxu0 %v1564
    %v1600 = vpop.f32.mrb[0].mxu0
    %v1601 = vadd.f32 %v99, %v1600
    %v1602 = vpop.f32.mrb[0].mxu0
    %v1603 = vpop.f32.mrb[0].mxu0
    %v1604 = vpop.f32.mrb[0].mxu0
    %1605 = vdwg.mxu0
    %v1606 = vtanh.pop %v1601
    %v1607 = vxor.u32 %v1601, 2147483648
    %v1608 = vmul.f32 %v1607, 1.442695
    %v1609 = vpow.pop %v1608
    %v1610 = vadd.f32 %v1609, 1.0
    %v1611 = vrcp.pop %v1610
    %v1612 = vmul.f32 1.0, %v1611
    %v1613 = vsel %vm61, %v1606, %v1612
    %v1614 = vmul.f32 %v1613, %v1342
    %1616 = vrot.lane.b32.xlu0 %v1613, 64
    %v1617 = vpop.permute.xlu0 %1616
    %v1619 = vmul.f32 %v1613, %v1617
    %1621 = vrot.lane.b32.xlu0 %v1619, 32
    %v1622 = vpop.permute.xlu0 %1621
    %v1624 = vadd.f32 %v1614, %v1622
    %v1625 = vtanh.pop %v1624
    %1627 = vrot.lane.b32.xlu0 %v1625, 64
    %v1628 = vpop.permute.xlu0 %1627
    %v1630 = vmul.f32 %v1613, %v1628
    %1632 = vrot.lane.b32.xlu0 %v1630, 32
    %v1633 = vpop.permute.xlu0 %1632
    %1636 = vrot.lane.b32.xlu0 %v1426, 64
    %v1637 = vpop.permute.xlu0 %1636
    %v1639 = vsel %vm192, %v1633, %v1637
    %v1640 = vpack.c.bf16 %v1639, %v1639
    %v1642 = vsel %vm225, %v1640, 0
    %1644 = vmatprep.subr.bf16.mxu0 0
    %1645 = vmatpush1.bf16.msra.mxu0 %v217
    %1646 = vmatprep.subr.bf16.mxu0 0
    %1647 = vmatpush1.bf16.msra.mxu0 %v218
    %1648 = vmatprep.subr.bf16.mxu0 0
    %1649 = vmatpush1.bf16.msra.mxu0 %v219
    %1650 = vmatprep.subr.bf16.mxu0 0
    %1651 = vmatpush1.bf16.msra.mxu0 %v220
    %1652 = vmatprep.subr.bf16.mxu0 0
    %1653 = vmatpush1.bf16.msra.mxu0 0
    %1654 = vmatprep.subr.bf16.mxu0 0
    %1655 = vmatpush1.bf16.msra.mxu0 0
    %1656 = vmatprep.subr.bf16.mxu0 0
    %1657 = vmatpush1.bf16.msra.mxu0 0
    %1658 = vmatprep.subr.bf16.mxu0 0
    %1659 = vmatpush1.bf16.msra.mxu0 0
    %1660 = vmatprep.subr.bf16.mxu0 0
    %1661 = vmatpush1.bf16.msra.mxu0 0
    %1662 = vmatprep.subr.bf16.mxu0 0
    %1663 = vmatpush1.bf16.msra.mxu0 0
    %1664 = vmatprep.subr.bf16.mxu0 0
    %1665 = vmatpush1.bf16.msra.mxu0 0
    %1666 = vmatprep.subr.bf16.mxu0 0
    %1667 = vmatpush1.bf16.msra.mxu0 0
    %1668 = vmatprep.subr.bf16.mxu0 0
    %1669 = vmatpush1.bf16.msra.mxu0 0
    %1670 = vmatprep.subr.bf16.mxu0 0
    %1671 = vmatpush1.bf16.msra.mxu0 0
    %1672 = vmatprep.subr.bf16.mxu0 0
    %1673 = vmatpush1.bf16.msra.mxu0 0
    %1674 = vmatprep.subr.bf16.mxu0 0
    %1675 = vmatpush1.bf16.msra.mxu0 0
    %1676 = vmatprep.mubr.bf16.mxu0 0
    %1677 = vmatmul.mubr.bf16.gmra.mrb[0].mxu0 %v1642
    %v1678 = vpop.f32.mrb[0].mxu0
    %v1679 = vadd.f32 %v199, %v1678
    %v1680 = vpop.f32.mrb[0].mxu0
    %v1681 = vpop.f32.mrb[0].mxu0
    %v1682 = vpop.f32.mrb[0].mxu0
    %1683 = vdwg.mxu0
    %v1684 = vtanh.pop %v1679
    %v1685 = vxor.u32 %v1679, 2147483648
    %v1686 = vmul.f32 %v1685, 1.442695
    %v1687 = vpow.pop %v1686
    %v1688 = vadd.f32 %v1687, 1.0
    %v1689 = vrcp.pop %v1688
    %v1690 = vmul.f32 1.0, %v1689
    %v1691 = vsel %vm61, %v1684, %v1690
    %v1692 = vmul.f32 %v1691, %v1420
    %1694 = vrot.lane.b32.xlu0 %v1691, 64
    %v1695 = vpop.permute.xlu0 %1694
    %v1697 = vmul.f32 %v1691, %v1695
    %1699 = vrot.lane.b32.xlu0 %v1697, 32
    %v1700 = vpop.permute.xlu0 %1699
    %v1702 = vadd.f32 %v1692, %v1700
    %v1703 = vtanh.pop %v1702
    %1705 = vrot.lane.b32.xlu0 %v1703, 64
    %v1706 = vpop.permute.xlu0 %1705
    %v1708 = vmul.f32 %v1691, %v1706
    %v1709 = vpack.c.bf16 %v1708, %v1708
    %1711 = vrot.lane.b32.xlu0 %v1709, 32
    %v1712 = vpop.permute.xlu0 %1711
    %v1714 = vsel %vm192, %v1712, 0
    %1716 = vmatprep.subr.bf16.mxu0 0
    %1717 = vmatpush1.bf16.msra.mxu0 %v312
    %1718 = vmatprep.subr.bf16.mxu0 0
    %1719 = vmatpush1.bf16.msra.mxu0 %v313
    %1720 = vmatprep.subr.bf16.mxu0 0
    %1721 = vmatpush1.bf16.msra.mxu0 0
    %1722 = vmatprep.subr.bf16.mxu0 0
    %1723 = vmatpush1.bf16.msra.mxu0 0
    %1724 = vmatprep.subr.bf16.mxu0 0
    %1725 = vmatpush1.bf16.msra.mxu0 0
    %1726 = vmatprep.subr.bf16.mxu0 0
    %1727 = vmatpush1.bf16.msra.mxu0 0
    %1728 = vmatprep.subr.bf16.mxu0 0
    %1729 = vmatpush1.bf16.msra.mxu0 0
    %1730 = vmatprep.subr.bf16.mxu0 0
    %1731 = vmatpush1.bf16.msra.mxu0 0
    %1732 = vmatprep.subr.bf16.mxu0 0
    %1733 = vmatpush1.bf16.msra.mxu0 0
    %1734 = vmatprep.subr.bf16.mxu0 0
    %1735 = vmatpush1.bf16.msra.mxu0 0
    %1736 = vmatprep.subr.bf16.mxu0 0
    %1737 = vmatpush1.bf16.msra.mxu0 0
    %1738 = vmatprep.subr.bf16.mxu0 0
    %1739 = vmatpush1.bf16.msra.mxu0 0
    %1740 = vmatprep.subr.bf16.mxu0 0
    %1741 = vmatpush1.bf16.msra.mxu0 0
    %1742 = vmatprep.subr.bf16.mxu0 0
    %1743 = vmatpush1.bf16.msra.mxu0 0
    %1744 = vmatprep.subr.bf16.mxu0 0
    %1745 = vmatpush1.bf16.msra.mxu0 0
    %1746 = vmatprep.subr.bf16.mxu0 0
    %1747 = vmatpush1.bf16.msra.mxu0 0
    %1748 = vmatprep.mubr.bf16.mxu0 0
    %1749 = vmatmul.mubr.bf16.gmra.mrb[0].mxu0 %v1714
    %v1750 = vpop.f32.mrb[0].mxu0
    %v1751 = vadd.f32 %v299, %v1750
    %v1752 = vpop.f32.mrb[0].mxu0
    %v1753 = vpop.f32.mrb[0].mxu0
    %v1754 = vpop.f32.mrb[0].mxu0
    %1755 = vdwg.mxu0
    %v1757 = vcombine.high %v1751, %v1751
    %v1759 = vunpack.c.l.s4 1966171168
    %v1760 = vunpack.c.0.s8 %v1759
    %v1761 = vlaneseq
    %v1762 = vshrl.u32 %v1761, 7
    %v1763 = vsub.s32 %v1760, %v1762
    %v1764 = vrot.slane %v1751, %v1763
    %v1766 = vunpack.c.l.s4 1966171168
    %v1767 = vunpack.c.0.s8 %v1766
    %v1768 = vlaneseq
    %v1769 = vshrl.u32 %v1768, 7
    %v1770 = vsub.s32 %v1767, %v1769
    %v1771 = vrot.slane %v1757, %v1770
    %v1772 = vcombine.high %v1764, %v1764
    %v1773 = vcombine.high %v1771, %v1771
    %v1775 = vunpack.c.l.s4 1966171168
    %v1776 = vunpack.c.0.s8 %v1775
    %v1777 = vlaneseq
    %v1778 = vshrl.u32 %v1777, 7
    %v1779 = vsub.s32 %v1776, %v1778
    %v1780 = vrot.slane %v1764, %v1779
    %v1782 = vunpack.c.l.s4 1966171168
    %v1783 = vunpack.c.0.s8 %v1782
    %v1784 = vlaneseq
    %v1785 = vshrl.u32 %v1784, 7
    %v1786 = vsub.s32 %v1783, %v1785
    %v1787 = vrot.slane %v1771, %v1786
    %v1789 = vunpack.c.l.s4 1966171168
    %v1790 = vunpack.c.0.s8 %v1789
    %v1791 = vlaneseq
    %v1792 = vshrl.u32 %v1791, 7
    %v1793 = vsub.s32 %v1790, %v1792
    %v1794 = vrot.slane %v1772, %v1793
    %v1796 = vunpack.c.l.s4 1966171168
    %v1797 = vunpack.c.0.s8 %v1796
    %v1798 = vlaneseq
    %v1799 = vshrl.u32 %v1798, 7
    %v1800 = vsub.s32 %v1797, %v1799
    %v1801 = vrot.slane %v1773, %v1800
    %v1802 = vcombine.high %v1780, %v1780
    %v1803 = vcombine.high %v1787, %v1787
    %v1804 = vcombine.high %v1794, %v1794
    %v1805 = vcombine.high %v1801, %v1801
    %1814 = vst [vmem:[#allocation2 + $0x5] sm:$0x1] %v1780
    %1815 = vst [vmem:[#allocation2 + $0xd] sm:$0x1] %v1794
    %1816 = vst [vmem:[#allocation2 + $0x15] sm:$0x1] %v1802
    %1817 = vst [vmem:[#allocation2 + $0x1d] sm:$0x1] %v1804
    %1818 = vst [vmem:[#allocation2 + $0x25] sm:$0x1] %v1787
    %1819 = vst [vmem:[#allocation2 + $0x2d] sm:$0x1] %v1801
    %1820 = vst [vmem:[#allocation2 + $0x35] sm:$0x1] %v1803
    %1821 = vst [vmem:[#allocation2 + $0x3d] sm:$0x1] %v1805
    %v1822 = vsel %vm89, %v70, %v28
    %v1823 = vsel %vm71, %v76, %v73
    %v1824 = vsel %vm74, %v79, %v1823
    %v1825 = vsel %vm77, %v82, %v1824
    %v1826 = vsel %vm80, %v85, %v1825
    %v1827 = vsel %vm83, %v88, %v1826
    %v1830 = vrot.slane %v1630, 2
    %1831 = vrot.lane.b32.xlu0 %v1830, 48
    %v1832 = vpop.permute.xlu0 %1831
    %v1834 = vsel %vm92, %v1822, %v1832
    %v1835 = vsel %vm92, %v1827, %v1832
    %v1836 = vpack.c.bf16 %v1835, %v1834
    %v1838 = vrot.slane %v1836, 3
    %v1840 = vsel %vm119, %v1838, 0
    %1842 = vmatprep.subr.bf16.mxu0 0
    %1843 = vmatpush1.bf16.msra.mxu0 %v113
    %1844 = vmatprep.subr.bf16.mxu0 0
    %1845 = vmatpush1.bf16.msra.mxu0 %v114
    %1846 = vmatprep.subr.bf16.mxu0 0
    %1847 = vmatpush1.bf16.msra.mxu0 %v115
    %1848 = vmatprep.subr.bf16.mxu0 0
    %1849 = vmatpush1.bf16.msra.mxu0 0
    %1850 = vmatprep.subr.bf16.mxu0 0
    %1851 = vmatpush1.bf16.msra.mxu0 0
    %1852 = vmatprep.subr.bf16.mxu0 0
    %1853 = vmatpush1.bf16.msra.mxu0 0
    %1854 = vmatprep.subr.bf16.mxu0 0
    %1855 = vmatpush1.bf16.msra.mxu0 0
    %1856 = vmatprep.subr.bf16.mxu0 0
    %1857 = vmatpush1.bf16.msra.mxu0 0
    %1858 = vmatprep.subr.bf16.mxu0 0
    %1859 = vmatpush1.bf16.msra.mxu0 0
    %1860 = vmatprep.subr.bf16.mxu0 0
    %1861 = vmatpush1.bf16.msra.mxu0 0
    %1862 = vmatprep.subr.bf16.mxu0 0
    %1863 = vmatpush1.bf16.msra.mxu0 0
    %1864 = vmatprep.subr.bf16.mxu0 0
    %1865 = vmatpush1.bf16.msra.mxu0 0
    %1866 = vmatprep.subr.bf16.mxu0 0
    %1867 = vmatpush1.bf16.msra.mxu0 0
    %1868 = vmatprep.subr.bf16.mxu0 0
    %1869 = vmatpush1.bf16.msra.mxu0 0
    %1870 = vmatprep.subr.bf16.mxu0 0
    %1871 = vmatpush1.bf16.msra.mxu0 0
    %1872 = vmatprep.subr.bf16.mxu0 0
    %1873 = vmatpush1.bf16.msra.mxu0 0
    %1874 = vmatprep.mubr.bf16.mxu0 0
    %1875 = vmatmul.mubr.bf16.gmra.mrb[0].mxu0 %v1840
    %v1876 = vpop.f32.mrb[0].mxu0
    %v1877 = vadd.f32 %v99, %v1876
    %v1878 = vpop.f32.mrb[0].mxu0
    %v1879 = vpop.f32.mrb[0].mxu0
    %v1880 = vpop.f32.mrb[0].mxu0
    %1881 = vdwg.mxu0
    %v1882 = vtanh.pop %v1877
    %v1883 = vxor.u32 %v1877, 2147483648
    %v1884 = vmul.f32 %v1883, 1.442695
    %v1885 = vpow.pop %v1884
    %v1886 = vadd.f32 %v1885, 1.0
    %v1887 = vrcp.pop %v1886
    %v1888 = vmul.f32 1.0, %v1887
    %v1889 = vsel %vm61, %v1882, %v1888
    %v1890 = vmul.f32 %v1889, %v1624
    %1892 = vrot.lane.b32.xlu0 %v1889, 64
    %v1893 = vpop.permute.xlu0 %1892
    %v1895 = vmul.f32 %v1889, %v1893
    %1897 = vrot.lane.b32.xlu0 %v1895, 32
    %v1898 = vpop.permute.xlu0 %1897
    %v1900 = vadd.f32 %v1890, %v1898
    %v1901 = vtanh.pop %v1900
    %1903 = vrot.lane.b32.xlu0 %v1901, 64
    %v1904 = vpop.permute.xlu0 %1903
    %v1906 = vmul.f32 %v1889, %v1904
    %1908 = vrot.lane.b32.xlu0 %v1906, 32
    %v1909 = vpop.permute.xlu0 %1908
    %1912 = vrot.lane.b32.xlu0 %v1708, 64
    %v1913 = vpop.permute.xlu0 %1912
    %v1915 = vsel %vm192, %v1909, %v1913
    %v1916 = vpack.c.bf16 %v1915, %v1915
    %v1918 = vsel %vm225, %v1916, 0
    %1920 = vmatprep.subr.bf16.mxu0 0
    %1921 = vmatpush1.bf16.msra.mxu0 %v217
    %1922 = vmatprep.subr.bf16.mxu0 0
    %1923 = vmatpush1.bf16.msra.mxu0 %v218
    %1924 = vmatprep.subr.bf16.mxu0 0
    %1925 = vmatpush1.bf16.msra.mxu0 %v219
    %1926 = vmatprep.subr.bf16.mxu0 0
    %1927 = vmatpush1.bf16.msra.mxu0 %v220
    %1928 = vmatprep.subr.bf16.mxu0 0
    %1929 = vmatpush1.bf16.msra.mxu0 0
    %1930 = vmatprep.subr.bf16.mxu0 0
    %1931 = vmatpush1.bf16.msra.mxu0 0
    %1932 = vmatprep.subr.bf16.mxu0 0
    %1933 = vmatpush1.bf16.msra.mxu0 0
    %1934 = vmatprep.subr.bf16.mxu0 0
    %1935 = vmatpush1.bf16.msra.mxu0 0
    %1936 = vmatprep.subr.bf16.mxu0 0
    %1937 = vmatpush1.bf16.msra.mxu0 0
    %1938 = vmatprep.subr.bf16.mxu0 0
    %1939 = vmatpush1.bf16.msra.mxu0 0
    %1940 = vmatprep.subr.bf16.mxu0 0
    %1941 = vmatpush1.bf16.msra.mxu0 0
    %1942 = vmatprep.subr.bf16.mxu0 0
    %1943 = vmatpush1.bf16.msra.mxu0 0
    %1944 = vmatprep.subr.bf16.mxu0 0
    %1945 = vmatpush1.bf16.msra.mxu0 0
    %1946 = vmatprep.subr.bf16.mxu0 0
    %1947 = vmatpush1.bf16.msra.mxu0 0
    %1948 = vmatprep.subr.bf16.mxu0 0
    %1949 = vmatpush1.bf16.msra.mxu0 0
    %1950 = vmatprep.subr.bf16.mxu0 0
    %1951 = vmatpush1.bf16.msra.mxu0 0
    %1952 = vmatprep.mubr.bf16.mxu0 0
    %1953 = vmatmul.mubr.bf16.gmra.mrb[0].mxu0 %v1918
    %v1954 = vpop.f32.mrb[0].mxu0
    %v1955 = vadd.f32 %v199, %v1954
    %v1956 = vpop.f32.mrb[0].mxu0
    %v1957 = vpop.f32.mrb[0].mxu0
    %v1958 = vpop.f32.mrb[0].mxu0
    %1959 = vdwg.mxu0
    %v1960 = vtanh.pop %v1955
    %v1961 = vxor.u32 %v1955, 2147483648
    %v1962 = vmul.f32 %v1961, 1.442695
    %v1963 = vpow.pop %v1962
    %v1964 = vadd.f32 %v1963, 1.0
    %v1965 = vrcp.pop %v1964
    %v1966 = vmul.f32 1.0, %v1965
    %v1967 = vsel %vm61, %v1960, %v1966
    %v1968 = vmul.f32 %v1967, %v1702
    %1970 = vrot.lane.b32.xlu0 %v1967, 64
    %v1971 = vpop.permute.xlu0 %1970
    %v1973 = vmul.f32 %v1967, %v1971
    %1975 = vrot.lane.b32.xlu0 %v1973, 32
    %v1976 = vpop.permute.xlu0 %1975
    %v1978 = vadd.f32 %v1968, %v1976
    %v1979 = vtanh.pop %v1978
    %1981 = vrot.lane.b32.xlu0 %v1979, 64
    %v1982 = vpop.permute.xlu0 %1981
    %v1984 = vmul.f32 %v1967, %v1982
    %v1985 = vpack.c.bf16 %v1984, %v1984
    %1987 = vrot.lane.b32.xlu0 %v1985, 32
    %v1988 = vpop.permute.xlu0 %1987
    %v1990 = vsel %vm192, %v1988, 0
    %1992 = vmatprep.subr.bf16.mxu0 0
    %1993 = vmatpush1.bf16.msra.mxu0 %v312
    %1994 = vmatprep.subr.bf16.mxu0 0
    %1995 = vmatpush1.bf16.msra.mxu0 %v313
    %1996 = vmatprep.subr.bf16.mxu0 0
    %1997 = vmatpush1.bf16.msra.mxu0 0
    %1998 = vmatprep.subr.bf16.mxu0 0
    %1999 = vmatpush1.bf16.msra.mxu0 0
    %2000 = vmatprep.subr.bf16.mxu0 0
    %2001 = vmatpush1.bf16.msra.mxu0 0
    %2002 = vmatprep.subr.bf16.mxu0 0
    %2003 = vmatpush1.bf16.msra.mxu0 0
    %2004 = vmatprep.subr.bf16.mxu0 0
    %2005 = vmatpush1.bf16.msra.mxu0 0
    %2006 = vmatprep.subr.bf16.mxu0 0
    %2007 = vmatpush1.bf16.msra.mxu0 0
    %2008 = vmatprep.subr.bf16.mxu0 0
    %2009 = vmatpush1.bf16.msra.mxu0 0
    %2010 = vmatprep.subr.bf16.mxu0 0
    %2011 = vmatpush1.bf16.msra.mxu0 0
    %2012 = vmatprep.subr.bf16.mxu0 0
    %2013 = vmatpush1.bf16.msra.mxu0 0
    %2014 = vmatprep.subr.bf16.mxu0 0
    %2015 = vmatpush1.bf16.msra.mxu0 0
    %2016 = vmatprep.subr.bf16.mxu0 0
    %2017 = vmatpush1.bf16.msra.mxu0 0
    %2018 = vmatprep.subr.bf16.mxu0 0
    %2019 = vmatpush1.bf16.msra.mxu0 0
    %2020 = vmatprep.subr.bf16.mxu0 0
    %2021 = vmatpush1.bf16.msra.mxu0 0
    %2022 = vmatprep.subr.bf16.mxu0 0
    %2023 = vmatpush1.bf16.msra.mxu0 0
    %2024 = vmatprep.mubr.bf16.mxu0 0
    %2025 = vmatmul.mubr.bf16.gmra.mrb[0].mxu0 %v1990
    %v2026 = vpop.f32.mrb[0].mxu0
    %v2027 = vadd.f32 %v299, %v2026
    %v2028 = vpop.f32.mrb[0].mxu0
    %v2029 = vpop.f32.mrb[0].mxu0
    %v2030 = vpop.f32.mrb[0].mxu0
    %2031 = vdwg.mxu0
    %v2033 = vcombine.high %v2027, %v2027
    %v2035 = vunpack.c.l.s4 1966171168
    %v2036 = vunpack.c.0.s8 %v2035
    %v2037 = vlaneseq
    %v2038 = vshrl.u32 %v2037, 7
    %v2039 = vsub.s32 %v2036, %v2038
    %v2040 = vrot.slane %v2027, %v2039
    %v2042 = vunpack.c.l.s4 1966171168
    %v2043 = vunpack.c.0.s8 %v2042
    %v2044 = vlaneseq
    %v2045 = vshrl.u32 %v2044, 7
    %v2046 = vsub.s32 %v2043, %v2045
    %v2047 = vrot.slane %v2033, %v2046
    %v2048 = vcombine.high %v2040, %v2040
    %v2049 = vcombine.high %v2047, %v2047
    %v2051 = vunpack.c.l.s4 1966171168
    %v2052 = vunpack.c.0.s8 %v2051
    %v2053 = vlaneseq
    %v2054 = vshrl.u32 %v2053, 7
    %v2055 = vsub.s32 %v2052, %v2054
    %v2056 = vrot.slane %v2040, %v2055
    %v2058 = vunpack.c.l.s4 1966171168
    %v2059 = vunpack.c.0.s8 %v2058
    %v2060 = vlaneseq
    %v2061 = vshrl.u32 %v2060, 7
    %v2062 = vsub.s32 %v2059, %v2061
    %v2063 = vrot.slane %v2047, %v2062
    %v2065 = vunpack.c.l.s4 1966171168
    %v2066 = vunpack.c.0.s8 %v2065
    %v2067 = vlaneseq
    %v2068 = vshrl.u32 %v2067, 7
    %v2069 = vsub.s32 %v2066, %v2068
    %v2070 = vrot.slane %v2048, %v2069
    %v2072 = vunpack.c.l.s4 1966171168
    %v2073 = vunpack.c.0.s8 %v2072
    %v2074 = vlaneseq
    %v2075 = vshrl.u32 %v2074, 7
    %v2076 = vsub.s32 %v2073, %v2075
    %v2077 = vrot.slane %v2049, %v2076
    %v2078 = vcombine.high %v2056, %v2056
    %v2079 = vcombine.high %v2063, %v2063
    %v2080 = vcombine.high %v2070, %v2070
    %v2081 = vcombine.high %v2077, %v2077
    %2090 = vst [vmem:[#allocation2 + $0x6] sm:$0x1] %v2056
    %2091 = vst [vmem:[#allocation2 + $0xe] sm:$0x1] %v2070
    %2092 = vst [vmem:[#allocation2 + $0x16] sm:$0x1] %v2078
    %2093 = vst [vmem:[#allocation2 + $0x1e] sm:$0x1] %v2080
    %2094 = vst [vmem:[#allocation2 + $0x26] sm:$0x1] %v2063
    %2095 = vst [vmem:[#allocation2 + $0x2e] sm:$0x1] %v2077
    %2096 = vst [vmem:[#allocation2 + $0x36] sm:$0x1] %v2079
    %2097 = vst [vmem:[#allocation2 + $0x3e] sm:$0x1] %v2081
    %v2098 = vsel %vm71, %v73, %v70
    %v2099 = vsel %vm74, %v76, %v2098
    %v2100 = vsel %vm77, %v79, %v2099
    %v2101 = vsel %vm80, %v82, %v2100
    %v2102 = vsel %vm83, %v85, %v2101
    %v2103 = vsel %vm86, %v88, %v2102
    %v2106 = vrot.slane %v1906, 1
    %2107 = vrot.lane.b32.xlu0 %v2106, 48
    %v2108 = vpop.permute.xlu0 %2107
    %v2110 = vsel %vm92, %v28, %v2108
    %v2111 = vsel %vm92, %v2103, %v2108
    %v2112 = vpack.c.bf16 %v2111, %v2110
    %v2114 = vshrl.u32 %v2112, 16
    %v2116 = vrot.slane %v2114, 3
    %v2117 = vshll.u32 %v2112, 16
    %v2119 = vrot.slane %v2117, 4
    %v2120 = vor.u32 %v2116, %v2119
    %v2122 = vsel %vm119, %v2120, 0
    %2124 = vmatprep.subr.bf16.mxu0 0
    %2125 = vmatpush1.bf16.msra.mxu0 %v113
    %2126 = vmatprep.subr.bf16.mxu0 0
    %2127 = vmatpush1.bf16.msra.mxu0 %v114
    %2128 = vmatprep.subr.bf16.mxu0 0
    %2129 = vmatpush1.bf16.msra.mxu0 %v115
    %2130 = vmatprep.subr.bf16.mxu0 0
    %2131 = vmatpush1.bf16.msra.mxu0 0
    %2132 = vmatprep.subr.bf16.mxu0 0
    %2133 = vmatpush1.bf16.msra.mxu0 0
    %2134 = vmatprep.subr.bf16.mxu0 0
    %2135 = vmatpush1.bf16.msra.mxu0 0
    %2136 = vmatprep.subr.bf16.mxu0 0
    %2137 = vmatpush1.bf16.msra.mxu0 0
    %2138 = vmatprep.subr.bf16.mxu0 0
    %2139 = vmatpush1.bf16.msra.mxu0 0
    %2140 = vmatprep.subr.bf16.mxu0 0
    %2141 = vmatpush1.bf16.msra.mxu0 0
    %2142 = vmatprep.subr.bf16.mxu0 0
    %2143 = vmatpush1.bf16.msra.mxu0 0
    %2144 = vmatprep.subr.bf16.mxu0 0
    %2145 = vmatpush1.bf16.msra.mxu0 0
    %2146 = vmatprep.subr.bf16.mxu0 0
    %2147 = vmatpush1.bf16.msra.mxu0 0
    %2148 = vmatprep.subr.bf16.mxu0 0
    %2149 = vmatpush1.bf16.msra.mxu0 0
    %2150 = vmatprep.subr.bf16.mxu0 0
    %2151 = vmatpush1.bf16.msra.mxu0 0
    %2152 = vmatprep.subr.bf16.mxu0 0
    %2153 = vmatpush1.bf16.msra.mxu0 0
    %2154 = vmatprep.subr.bf16.mxu0 0
    %2155 = vmatpush1.bf16.msra.mxu0 0
    %2156 = vmatprep.mubr.bf16.mxu0 0
    %2157 = vmatmul.mubr.bf16.gmra.mrb[0].mxu0 %v2122
    %v2158 = vpop.f32.mrb[0].mxu0
    %v2159 = vadd.f32 %v99, %v2158
    %v2160 = vpop.f32.mrb[0].mxu0
    %v2161 = vpop.f32.mrb[0].mxu0
    %v2162 = vpop.f32.mrb[0].mxu0
    %2163 = vdwg.mxu0
    %v2164 = vtanh.pop %v2159
    %v2165 = vxor.u32 %v2159, 2147483648
    %v2166 = vmul.f32 %v2165, 1.442695
    %v2167 = vpow.pop %v2166
    %v2168 = vadd.f32 %v2167, 1.0
    %v2169 = vrcp.pop %v2168
    %v2170 = vmul.f32 1.0, %v2169
    %v2171 = vsel %vm61, %v2164, %v2170
    %v2172 = vmul.f32 %v2171, %v1900
    %2174 = vrot.lane.b32.xlu0 %v2171, 64
    %v2175 = vpop.permute.xlu0 %2174
    %v2177 = vmul.f32 %v2171, %v2175
    %2179 = vrot.lane.b32.xlu0 %v2177, 32
    %v2180 = vpop.permute.xlu0 %2179
    %v2182 = vadd.f32 %v2172, %v2180
    %v2183 = vtanh.pop %v2182
    %2185 = vrot.lane.b32.xlu0 %v2183, 64
    %v2186 = vpop.permute.xlu0 %2185
    %v2188 = vmul.f32 %v2171, %v2186
    %2190 = vrot.lane.b32.xlu0 %v2188, 32
    %v2191 = vpop.permute.xlu0 %2190
    %2194 = vrot.lane.b32.xlu0 %v1984, 64
    %v2195 = vpop.permute.xlu0 %2194
    %v2197 = vsel %vm192, %v2191, %v2195
    %v2198 = vpack.c.bf16 %v2197, %v2197
    %v2200 = vsel %vm225, %v2198, 0
    %2202 = vmatprep.subr.bf16.mxu0 0
    %2203 = vmatpush1.bf16.msra.mxu0 %v217
    %2204 = vmatprep.subr.bf16.mxu0 0
    %2205 = vmatpush1.bf16.msra.mxu0 %v218
    %2206 = vmatprep.subr.bf16.mxu0 0
    %2207 = vmatpush1.bf16.msra.mxu0 %v219
    %2208 = vmatprep.subr.bf16.mxu0 0
    %2209 = vmatpush1.bf16.msra.mxu0 %v220
    %2210 = vmatprep.subr.bf16.mxu0 0
    %2211 = vmatpush1.bf16.msra.mxu0 0
    %2212 = vmatprep.subr.bf16.mxu0 0
    %2213 = vmatpush1.bf16.msra.mxu0 0
    %2214 = vmatprep.subr.bf16.mxu0 0
    %2215 = vmatpush1.bf16.msra.mxu0 0
    %2216 = vmatprep.subr.bf16.mxu0 0
    %2217 = vmatpush1.bf16.msra.mxu0 0
    %2218 = vmatprep.subr.bf16.mxu0 0
    %2219 = vmatpush1.bf16.msra.mxu0 0
    %2220 = vmatprep.subr.bf16.mxu0 0
    %2221 = vmatpush1.bf16.msra.mxu0 0
    %2222 = vmatprep.subr.bf16.mxu0 0
    %2223 = vmatpush1.bf16.msra.mxu0 0
    %2224 = vmatprep.subr.bf16.mxu0 0
    %2225 = vmatpush1.bf16.msra.mxu0 0
    %2226 = vmatprep.subr.bf16.mxu0 0
    %2227 = vmatpush1.bf16.msra.mxu0 0
    %2228 = vmatprep.subr.bf16.mxu0 0
    %2229 = vmatpush1.bf16.msra.mxu0 0
    %2230 = vmatprep.subr.bf16.mxu0 0
    %2231 = vmatpush1.bf16.msra.mxu0 0
    %2232 = vmatprep.subr.bf16.mxu0 0
    %2233 = vmatpush1.bf16.msra.mxu0 0
    %2234 = vmatprep.mubr.bf16.mxu0 0
    %2235 = vmatmul.mubr.bf16.gmra.mrb[0].mxu0 %v2200
    %v2236 = vpop.f32.mrb[0].mxu0
    %v2237 = vadd.f32 %v199, %v2236
    %v2238 = vpop.f32.mrb[0].mxu0
    %v2239 = vpop.f32.mrb[0].mxu0
    %v2240 = vpop.f32.mrb[0].mxu0
    %2241 = vdwg.mxu0
    %v2242 = vtanh.pop %v2237
    %v2243 = vxor.u32 %v2237, 2147483648
    %v2244 = vmul.f32 %v2243, 1.442695
    %v2245 = vpow.pop %v2244
    %v2246 = vadd.f32 %v2245, 1.0
    %v2247 = vrcp.pop %v2246
    %v2248 = vmul.f32 1.0, %v2247
    %v2249 = vsel %vm61, %v2242, %v2248
    %v2250 = vmul.f32 %v2249, %v1978
    %2252 = vrot.lane.b32.xlu0 %v2249, 64
    %v2253 = vpop.permute.xlu0 %2252
    %v2255 = vmul.f32 %v2249, %v2253
    %2257 = vrot.lane.b32.xlu0 %v2255, 32
    %v2258 = vpop.permute.xlu0 %2257
    %v2260 = vadd.f32 %v2250, %v2258
    %v2261 = vtanh.pop %v2260
    %2263 = vrot.lane.b32.xlu0 %v2261, 64
    %v2264 = vpop.permute.xlu0 %2263
    %v2266 = vmul.f32 %v2249, %v2264
    %v2267 = vpack.c.bf16 %v2266, %v2266
    %2269 = vrot.lane.b32.xlu0 %v2267, 32
    %v2270 = vpop.permute.xlu0 %2269
    %v2272 = vsel %vm192, %v2270, 0
    %2274 = vmatprep.subr.bf16.mxu0 0
    %2275 = vmatpush1.bf16.msra.mxu0 %v312
    %2276 = vmatprep.subr.bf16.mxu0 0
    %2277 = vmatpush1.bf16.msra.mxu0 %v313
    %2278 = vmatprep.subr.bf16.mxu0 0
    %2279 = vmatpush1.bf16.msra.mxu0 0
    %2280 = vmatprep.subr.bf16.mxu0 0
    %2281 = vmatpush1.bf16.msra.mxu0 0
    %2282 = vmatprep.subr.bf16.mxu0 0
    %2283 = vmatpush1.bf16.msra.mxu0 0
    %2284 = vmatprep.subr.bf16.mxu0 0
    %2285 = vmatpush1.bf16.msra.mxu0 0
    %2286 = vmatprep.subr.bf16.mxu0 0
    %2287 = vmatpush1.bf16.msra.mxu0 0
    %2288 = vmatprep.subr.bf16.mxu0 0
    %2289 = vmatpush1.bf16.msra.mxu0 0
    %2290 = vmatprep.subr.bf16.mxu0 0
    %2291 = vmatpush1.bf16.msra.mxu0 0
    %2292 = vmatprep.subr.bf16.mxu0 0
    %2293 = vmatpush1.bf16.msra.mxu0 0
    %2294 = vmatprep.subr.bf16.mxu0 0
    %2295 = vmatpush1.bf16.msra.mxu0 0
    %2296 = vmatprep.subr.bf16.mxu0 0
    %2297 = vmatpush1.bf16.msra.mxu0 0
    %2298 = vmatprep.subr.bf16.mxu0 0
    %2299 = vmatpush1.bf16.msra.mxu0 0
    %2300 = vmatprep.subr.bf16.mxu0 0
    %2301 = vmatpush1.bf16.msra.mxu0 0
    %2302 = vmatprep.subr.bf16.mxu0 0
    %2303 = vmatpush1.bf16.msra.mxu0 0
    %2304 = vmatprep.subr.bf16.mxu0 0
    %2305 = vmatpush1.bf16.msra.mxu0 0
    %2306 = vmatprep.mubr.bf16.mxu0 0
    %2307 = vmatmul.mubr.bf16.gmra.mrb[0].mxu0 %v2272
    %v2308 = vpop.f32.mrb[0].mxu0
    %v2309 = vadd.f32 %v299, %v2308
    %v2310 = vpop.f32.mrb[0].mxu0
    %v2311 = vpop.f32.mrb[0].mxu0
    %v2312 = vpop.f32.mrb[0].mxu0
    %2313 = vdwg.mxu0
    %v2315 = vcombine.high %v2309, %v2309
    %v2317 = vunpack.c.l.s4 1966171168
    %v2318 = vunpack.c.0.s8 %v2317
    %v2319 = vlaneseq
    %v2320 = vshrl.u32 %v2319, 7
    %v2321 = vsub.s32 %v2318, %v2320
    %v2322 = vrot.slane %v2309, %v2321
    %v2324 = vunpack.c.l.s4 1966171168
    %v2325 = vunpack.c.0.s8 %v2324
    %v2326 = vlaneseq
    %v2327 = vshrl.u32 %v2326, 7
    %v2328 = vsub.s32 %v2325, %v2327
    %v2329 = vrot.slane %v2315, %v2328
    %v2330 = vcombine.high %v2322, %v2322
    %v2331 = vcombine.high %v2329, %v2329
    %v2333 = vunpack.c.l.s4 1966171168
    %v2334 = vunpack.c.0.s8 %v2333
    %v2335 = vlaneseq
    %v2336 = vshrl.u32 %v2335, 7
    %v2337 = vsub.s32 %v2334, %v2336
    %v2338 = vrot.slane %v2322, %v2337
    %v2340 = vunpack.c.l.s4 1966171168
    %v2341 = vunpack.c.0.s8 %v2340
    %v2342 = vlaneseq
    %v2343 = vshrl.u32 %v2342, 7
    %v2344 = vsub.s32 %v2341, %v2343
    %v2345 = vrot.slane %v2329, %v2344
    %v2347 = vunpack.c.l.s4 1966171168
    %v2348 = vunpack.c.0.s8 %v2347
    %v2349 = vlaneseq
    %v2350 = vshrl.u32 %v2349, 7
    %v2351 = vsub.s32 %v2348, %v2350
    %v2352 = vrot.slane %v2330, %v2351
    %v2354 = vunpack.c.l.s4 1966171168
    %v2355 = vunpack.c.0.s8 %v2354
    %v2356 = vlaneseq
    %v2357 = vshrl.u32 %v2356, 7
    %v2358 = vsub.s32 %v2355, %v2357
    %v2359 = vrot.slane %v2331, %v2358
    %v2360 = vcombine.high %v2338, %v2338
    %v2361 = vcombine.high %v2345, %v2345
    %v2362 = vcombine.high %v2352, %v2352
    %v2363 = vcombine.high %v2359, %v2359
    %2372 = vst [vmem:[#allocation2 + $0x7] sm:$0x1] %v2338
    %2373 = vst [vmem:[#allocation2 + $0xf] sm:$0x1] %v2352
    %2374 = vst [vmem:[#allocation2 + $0x17] sm:$0x1] %v2360
    %2375 = vst [vmem:[#allocation2 + $0x1f] sm:$0x1] %v2362
    %2376 = vst [vmem:[#allocation2 + $0x27] sm:$0x1] %v2345
    %2377 = vst [vmem:[#allocation2 + $0x2f] sm:$0x1] %v2359
    %2378 = vst [vmem:[#allocation2 + $0x37] sm:$0x1] %v2361
    %2379 = vst [vmem:[#allocation2 + $0x3f] sm:$0x1] %v2363
    // Predicated region
    $region30: #{lstm_model_forward.1} parent=1 // pred_check
      _
    $region31: #{lstm_model_forward.1} parent=1 // pred_check_branch
      %2381 = sbr.rel (0) target = $region33
    $region32: #{lstm_model_forward.1} parent=1 // pred_region
      %s2383 = ssub.s32 1024, 1024
      %2384 = vsyncadd [#allocation3], %s2383
      %s2385 = sshll.u32 [#allocation2], 4
      %s2386 = int_to_ptr.vmem [resolvable:$true] %s2385
      %2391 = dma.vmem_to_hbm [thread:$0]  %s2386, 1024, %s7, [#allocation3], 128, 128, 8
    $region33: #{lstm_model_forward.1} parent=1 // pred_fallthru
      _
    // Predicated region
    $region34: #{lstm_model_forward.1} parent=1 // pred_check
      _
    $region35: #{lstm_model_forward.1} parent=1 // pred_check_branch
      %2393 = sbr.rel (0) target = $region37
    $region36: #{lstm_model_forward.1} parent=1 // pred_region
      %2394 = dma.done [#allocation3], 1024
    $region37: #{lstm_model_forward.1} parent=1 // pred_fallthru
      _
    %2395 = vsyncpa [#allocation3], 1

</llo_original>
